<compile_context>
chip_gen: v7x
topology: tpu7x:2x2x1
jax: 0.10.0
libtpu: 0.0.40
codegen_flags: <defaults>
</compile_context>

<pallas_src>
import numpy as np

import jax
import jax.numpy as jnp
from jax.experimental import pallas as pl
from jax.experimental.pallas import tpu as pltpu

_NEG_BIG = -1e30  # finite pad value for the padded class logits (never -inf)


# ----------------------------- fused Pallas kernel ---------------------------

def _net_fused_kernel(xim_ref, t1k_ref, b1u_ref, t2_ref, b2u_ref,
                      w3r_ref, b3_ref, w4_ref, b4_ref, o_ref):
    BT = xim_ref.shape[0]

    # ---- conv1 (1->10, k=5): one K-stacked matmul over both row-parity branches.
    # Input rows 0..15 = even conv1 output rows (io = 2p), rows 16..31 = odd rows.
    xim = xim_ref[...]                                              # (BT, 32, 140)
    c1 = jnp.dot(xim.reshape(BT * 32, 140), t1k_ref[...],
                 preferred_element_type=jnp.float32)                # (BT*32, 240) lanes 10*jo+co
    c1_3d = c1.reshape(BT, 32, 240)

    # ---- maxpool 2x2 + bias + relu
    # row pool == max over the two parity branches (aligned 16-row halves);
    # col pool == lane shift by 10; bias commutes with max-pooling.
    m_row = jnp.maximum(c1_3d[:, 0:16, :], c1_3d[:, 16:32, :])      # (BT, 16, 240)
    m2 = m_row.reshape(BT * 16, 240)
    m_col = jnp.maximum(m2[:, 0:230], m2[:, 10:240])                # valid lanes 20q+c
    h1 = jnp.maximum(m_col + b1u_ref[...], 0.0)                     # (BT*16, 230)

    # ---- conv2 (10->20, k=5): 5 banded matmuls over 8-row tap windows.
    # t2 rows are zero at the garbage lane positions of h1, so no compaction needed.
    h1_3d = h1.reshape(BT, 16, 230)
    acc2 = None
    for di in range(5):
        lhs = h1_3d[:, di:di + 8, :].reshape(BT * 8, 230)
        y = jnp.dot(lhs, t2_ref[di],
                    preferred_element_type=jnp.float32)             # (BT*8, 160) lanes 20*jo+co
        acc2 = y if acc2 is None else acc2 + y

    # ---- maxpool 2x2 (col part) + bias + relu
    d = jnp.maximum(acc2[:, 0:140], acc2[:, 20:160])                # valid lanes 40q+co
    d = jnp.maximum(d + b2u_ref[...], 0.0)                          # (BT*8, 140)

    # ---- maxpool (row part) + NCHW flatten folded into fc1:
    # pairwise row max via single-sublane extractions, then 4 small matmuls.
    d3 = d.reshape(BT, 8, 140)
    fc1 = b3_ref[...]                                               # (1, 50), broadcasts
    for p2 in range(4):
        feat = jnp.maximum(d3[:, 2 * p2, :], d3[:, 2 * p2 + 1, :])  # (BT, 140)
        fc1 = fc1 + jnp.dot(feat, w3r_ref[p2],
                            preferred_element_type=jnp.float32)     # (BT, 50)
    h3 = jnp.maximum(fc1, 0.0)

    # ---- fc2 (padded to 128 lanes) + log_softmax (pad lanes underflow to 0 in exp)
    z = jnp.dot(h3, w4_ref[...], preferred_element_type=jnp.float32) + b4_ref[...]
    m = jnp.max(z, axis=-1, keepdims=True)
    e = jnp.exp(z - m)
    lse = jnp.log(jnp.sum(e, axis=-1, keepdims=True))
    o_ref[...] = z - m - lse                                        # (BT, 128)


# --------------------------- host-side weight prep ---------------------------

def prepare_pallas_params(params):
    """One-time rearrangement of the PyTorch-layout weights into banded matmul
    matrices / lane layouts consumed by the fused kernel (runs outside jit)."""
    w1 = np.asarray(params["conv1_w"], np.float32)      # (10, 1, 5, 5)
    b1 = np.asarray(params["conv1_b"], np.float32)      # (10,)
    w2 = np.asarray(params["conv2_w"], np.float32)      # (20, 10, 5, 5)
    b2 = np.asarray(params["conv2_b"], np.float32)      # (20,)
    fc1_w = np.asarray(params["fc1_w"], np.float32)     # (50, 320)
    fc1_b = np.asarray(params["fc1_b"], np.float32)     # (50,)
    fc2_w = np.asarray(params["fc2_w"], np.float32)     # (10, 50)
    fc2_b = np.asarray(params["fc2_b"], np.float32)     # (10,)

    # conv1: K-stacked banded matrix (5 taps * 28 cols -> 140 K) over the width
    # axis; output lanes (jo, co) = jo*10 + co.
    t1k = np.zeros((140, 240), np.float32)
    for di in range(5):
        for dj in range(5):
            for jo in range(24):
                t1k[28 * di + jo + dj, jo * 10:(jo + 1) * 10] = w1[:, 0, di, dj]
    b1u = np.zeros((1, 230), np.float32)
    for q in range(12):
        b1u[0, 20 * q:20 * q + 10] = b1                  # valid pooled lanes 20q + c

    # conv2: banded matrices consuming the *uncompacted* pooled conv1 layout
    # (230 lanes; rows at invalid lane positions stay zero).
    t2 = np.zeros((5, 230, 160), np.float32)
    for di in range(5):
        for dj in range(5):
            for jo in range(8):
                q = jo + dj
                t2[di, 20 * q:20 * q + 10, 20 * jo:20 * jo + 20] = w2[:, :, di, dj].T
    b2u = np.zeros((1, 140), np.float32)
    for q in range(4):
        b2u[0, 40 * q:40 * q + 20] = b2                  # valid pooled lanes 40q + co

    # fc1: split into 4 row-blocks (one per pooled output row p2) in the
    # uncompacted pool2 lane layout, absorbing PyTorch's NCHW flatten order.
    w3_4d = fc1_w.reshape(50, 20, 4, 4)                  # (n, co, p2, q)
    w3r = np.zeros((4, 140, 50), np.float32)
    for p2 in range(4):
        for q in range(4):
            for co in range(20):
                w3r[p2, 40 * q + co, :] = w3_4d[:, co, p2, q]

    # fc2: lane-dense padded to 128 classes (zero weights, -1e30 bias on pads).
    w4p = np.zeros((50, 128), np.float32)
    w4p[:, :10] = fc2_w.T
    b4p = np.full((1, 128), _NEG_BIG, np.float32)
    b4p[0, :10] = fc2_b

    prep = dict(t1k=t1k, b1u=b1u, t2=t2, b2u=b2u, w3r=w3r,
                b3=fc1_b.reshape(1, 50), w4p=w4p, b4p=b4p)
    return {k: jnp.asarray(v) for k, v in prep.items()}


# --------------------------------- forward -----------------------------------

def _round_up(a, m):
    return ((a + m - 1) // m) * m


def net_forward(x_nchw, prep):
    """x_nchw: (B, 1, 28, 28) float32, PyTorch layout. Returns (B, 10) log-probs."""
    B = x_nchw.shape[0]
    # Batch tile: as big as comfortably fits VMEM (<=128, multiple of 8); for
    # larger batches pick ~ceil(B/2) so the "parallel" grid has >=2 steps.
    BT = min(128, max(8, _round_up((B + 1) // 2, 8)))
    Bp = _round_up(B, BT)

    # XLA-side glue (outside the kernel): drop channel, pad, and build the
    # H-only conv1 im2col with the even/odd output-row branches stacked on the
    # row axis (rows 0..15 = even branch, rows 16..31 = odd branch).
    x2 = x_nchw.reshape(B, 28, 28).astype(jnp.float32)
    x2 = jnp.pad(x2, ((0, Bp - B), (0, 8), (0, 0)))                  # (Bp, 36, 28)
    slabs = []
    for u in (0, 1):
        taps = [x2[:, u + di: u + di + 31: 2, :] for di in range(5)]  # (Bp, 16, 28) each
        slabs.append(jnp.concatenate(taps, axis=-1))                  # (Bp, 16, 140)
    xim = jnp.concatenate(slabs, axis=1)                              # (Bp, 32, 140)

    out = pl.pallas_call(
        _net_fused_kernel,
        out_shape=jax.ShapeDtypeStruct((Bp, 128), jnp.float32),
        grid=(Bp // BT,),
        in_specs=[
            pl.BlockSpec((BT, 32, 140), lambda i: (i, 0, 0)),
            # Weight blocks: constant index_maps -> pipeliner does not re-DMA them.
            pl.BlockSpec((140, 240), lambda i: (0, 0)),
            pl.BlockSpec((1, 230), lambda i: (0, 0)),
            pl.BlockSpec((5, 230, 160), lambda i: (0, 0, 0)),
            pl.BlockSpec((1, 140), lambda i: (0, 0)),
            pl.BlockSpec((4, 140, 50), lambda i: (0, 0, 0)),
            pl.BlockSpec((1, 50), lambda i: (0, 0)),
            pl.BlockSpec((50, 128), lambda i: (0, 0)),
            pl.BlockSpec((1, 128), lambda i: (0, 0)),
        ],
        out_specs=pl.BlockSpec((BT, 128), lambda i: (i, 0)),
        compiler_params=pltpu.CompilerParams(
            dimension_semantics=("parallel",),
            vmem_limit_bytes=48 * 1024 * 1024),
    )(xim, prep["t1k"], prep["b1u"], prep["t2"], prep["b2u"],
      prep["w3r"], prep["b3"], prep["w4p"], prep["b4p"])
    return out[:B, :10]


# ------------------------------- param init -----------------------------------

def init_params(key):
    ks = jax.random.split(key, 8)
    return {
        "conv1_w": 0.1 * jax.random.normal(ks[0], (10, 1, 5, 5), jnp.float32),
        "conv1_b": 0.1 * jax.random.normal(ks[1], (10,), jnp.float32),
        "conv2_w": 0.1 * jax.random.normal(ks[2], (20, 10, 5, 5), jnp.float32),
        "conv2_b": 0.1 * jax.random.normal(ks[3], (20,), jnp.float32),
        "fc1_w": 0.05 * jax.random.normal(ks[4], (50, 320), jnp.float32),
        "fc1_b": 0.05 * jax.random.normal(ks[5], (50,), jnp.float32),
        "fc2_w": 0.05 * jax.random.normal(ks[6], (10, 50), jnp.float32),
        "fc2_b": 0.05 * jax.random.normal(ks[7], (10,), jnp.float32),
    }


# ----------------------------- pure-JAX reference -----------------------------

def net_forward_ref(x_nchw, params):
    dn = ("NCHW", "OIHW", "NCHW")
    c1 = jax.lax.conv_general_dilated(x_nchw, params["conv1_w"], (1, 1), "VALID",
                                      dimension_numbers=dn)
    c1 = c1 + params["conv1_b"][None, :, None, None]
    p1 = jax.lax.reduce_window(c1, -jnp.inf, jax.lax.max,
                               (1, 1, 2, 2), (1, 1, 2, 2), "VALID")
    h1 = jnp.maximum(p1, 0.0)
    c2 = jax.lax.conv_general_dilated(h1, params["conv2_w"], (1, 1), "VALID",
                                      dimension_numbers=dn)
    c2 = c2 + params["conv2_b"][None, :, None, None]
    p2 = jax.lax.reduce_window(c2, -jnp.inf, jax.lax.max,
                               (1, 1, 2, 2), (1, 1, 2, 2), "VALID")
    h2 = jnp.maximum(p2, 0.0)
    feat = h2.reshape(h2.shape[0], 320)
    h3 = jnp.maximum(feat @ params["fc1_w"].T + params["fc1_b"], 0.0)
    z = h3 @ params["fc2_w"].T + params["fc2_b"]
    return jax.nn.log_softmax(z, axis=1)


# ----------------------------------- main --------------------------------------

if __name__ == "__main__":
    key = jax.random.PRNGKey(0)
    k_in, k_params = jax.random.split(key)
    x = jax.random.normal(k_in, (2, 1, 28, 28), jnp.float32)   # NCHW like PyTorch
    params = init_params(k_params)
    prep = prepare_pallas_params(params)

    fwd = jax.jit(net_forward)
    out = jax.block_until_ready(fwd(x, prep))

    ref = jax.block_until_ready(net_forward_ref(x, params))
    assert out.shape == (2, 10)
    assert jnp.allclose(out, ref, rtol=1e-4, atol=1e-4), "mismatch vs reference"
    assert jnp.allclose(jnp.sum(jnp.exp(out), axis=1), 1.0, atol=1e-4)

    print("KERNEL_OK")
</pallas_src>

<mosaic_0001>
module attributes {stable_mosaic.version = 11 : i64} {
  func.func @_net_fused_kernel(%arg0: i32, %arg1: memref<8x32x140xf32, #tpu.memory_space<vmem>>, %arg2: memref<140x240xf32, #tpu.memory_space<vmem>>, %arg3: memref<1x230xf32, #tpu.memory_space<vmem>>, %arg4: memref<5x230x160xf32, #tpu.memory_space<vmem>>, %arg5: memref<1x140xf32, #tpu.memory_space<vmem>>, %arg6: memref<4x140x50xf32, #tpu.memory_space<vmem>>, %arg7: memref<1x50xf32, #tpu.memory_space<vmem>>, %arg8: memref<50x128xf32, #tpu.memory_space<vmem>>, %arg9: memref<1x128xf32, #tpu.memory_space<vmem>>, %arg10: memref<8x128xf32, #tpu.memory_space<vmem>>) attributes {dimension_semantics = [#tpu.dimension_semantics<parallel>], iteration_bounds = array<i64: 1>, scalar_prefetch = 0 : i64, scratch_operands = 0 : i64, tpu.core_type = #tpu.core_type<tc>, window_params = [{transform_indices = @transform_0, window_bounds = array<i64: 8, 32, 140>}, {pipeline_mode = #tpu.pipeline_mode<synchronous>, transform_indices = @transform_1, window_bounds = array<i64: 140, 240>}, {pipeline_mode = #tpu.pipeline_mode<synchronous>, transform_indices = @transform_2, window_bounds = array<i64: 1, 230>}, {pipeline_mode = #tpu.pipeline_mode<synchronous>, transform_indices = @transform_3, window_bounds = array<i64: 5, 230, 160>}, {pipeline_mode = #tpu.pipeline_mode<synchronous>, transform_indices = @transform_4, window_bounds = array<i64: 1, 140>}, {pipeline_mode = #tpu.pipeline_mode<synchronous>, transform_indices = @transform_5, window_bounds = array<i64: 4, 140, 50>}, {pipeline_mode = #tpu.pipeline_mode<synchronous>, transform_indices = @transform_6, window_bounds = array<i64: 1, 50>}, {pipeline_mode = #tpu.pipeline_mode<synchronous>, transform_indices = @transform_7, window_bounds = array<i64: 50, 128>}, {pipeline_mode = #tpu.pipeline_mode<synchronous>, transform_indices = @transform_8, window_bounds = array<i64: 1, 128>}, {transform_indices = @transform_9, window_bounds = array<i64: 8, 128>}]} {
    %c0 = arith.constant 0 : index
    %c0_0 = arith.constant 0 : index
    %c0_1 = arith.constant 0 : index
    %0 = vector.load %arg1[%c0, %c0_0, %c0_1] : memref<8x32x140xf32, #tpu.memory_space<vmem>>, vector<8x32x140xf32>
    %1 = vector.shape_cast %0 : vector<8x32x140xf32> to vector<256x140xf32>
    %c0_2 = arith.constant 0 : index
    %c0_3 = arith.constant 0 : index
    %2 = vector.load %arg2[%c0_2, %c0_3] : memref<140x240xf32, #tpu.memory_space<vmem>>, vector<140x240xf32>
    %cst = arith.constant dense<0.000000e+00> : vector<256x240xf32>
    %3 = tpu.matmul %1, %2, %cst {dimension_numbers = #tpu.dot_dimension_numbers<[1], [0], [0], [1], [0, 0, 1, 1], [], []>} : vector<256x140xf32>, vector<140x240xf32>, vector<256x240xf32> -> vector<256x240xf32>
    %4 = vector.shape_cast %3 : vector<256x240xf32> to vector<8x32x240xf32>
    %5 = vector.extract_strided_slice %4 {offsets = [0, 0, 0], sizes = [8, 16, 240], strides = [1, 1, 1]} : vector<8x32x240xf32> to vector<8x16x240xf32>
    %6 = vector.extract_strided_slice %4 {offsets = [0, 16, 0], sizes = [8, 16, 240], strides = [1, 1, 1]} : vector<8x32x240xf32> to vector<8x16x240xf32>
    %7 = arith.maximumf %5, %6 : vector<8x16x240xf32>
    %8 = vector.shape_cast %7 : vector<8x16x240xf32> to vector<128x240xf32>
    %9 = vector.extract_strided_slice %8 {offsets = [0, 0], sizes = [128, 230], strides = [1, 1]} : vector<128x240xf32> to vector<128x230xf32>
    %10 = vector.extract_strided_slice %8 {offsets = [0, 10], sizes = [128, 230], strides = [1, 1]} : vector<128x240xf32> to vector<128x230xf32>
    %11 = arith.maximumf %9, %10 : vector<128x230xf32>
    %c0_4 = arith.constant 0 : index
    %c0_5 = arith.constant 0 : index
    %12 = vector.load %arg3[%c0_4, %c0_5] : memref<1x230xf32, #tpu.memory_space<vmem>>, vector<1x230xf32>
    %13 = vector.broadcast %12 : vector<1x230xf32> to vector<128x230xf32>
    %14 = arith.addf %11, %13 : vector<128x230xf32>
    %cst_6 = arith.constant 0.000000e+00 : f32
    %15 = vector.broadcast %cst_6 : f32 to vector<128x230xf32>
    %16 = arith.maximumf %14, %15 : vector<128x230xf32>
    %17 = vector.shape_cast %16 : vector<128x230xf32> to vector<8x16x230xf32>
    %18 = vector.extract_strided_slice %17 {offsets = [0, 0, 0], sizes = [8, 8, 230], strides = [1, 1, 1]} : vector<8x16x230xf32> to vector<8x8x230xf32>
    %19 = vector.shape_cast %18 : vector<8x8x230xf32> to vector<64x230xf32>
    %c0_7 = arith.constant 0 : index
    %c0_8 = arith.constant 0 : index
    %c0_9 = arith.constant 0 : index
    %20 = vector.load %arg4[%c0_7, %c0_8, %c0_9] : memref<5x230x160xf32, #tpu.memory_space<vmem>>, vector<1x230x160xf32>
    %21 = vector.shape_cast %20 : vector<1x230x160xf32> to vector<230x160xf32>
    %cst_10 = arith.constant dense<0.000000e+00> : vector<64x160xf32>
    %22 = tpu.matmul %19, %21, %cst_10 {dimension_numbers = #tpu.dot_dimension_numbers<[1], [0], [0], [1], [0, 0, 1, 1], [], []>} : vector<64x230xf32>, vector<230x160xf32>, vector<64x160xf32> -> vector<64x160xf32>
    %23 = vector.extract_strided_slice %17 {offsets = [0, 1, 0], sizes = [8, 8, 230], strides = [1, 1, 1]} : vector<8x16x230xf32> to vector<8x8x230xf32>
    %24 = vector.shape_cast %23 : vector<8x8x230xf32> to vector<64x230xf32>
    %c1 = arith.constant 1 : index
    %c0_11 = arith.constant 0 : index
    %c0_12 = arith.constant 0 : index
    %25 = vector.load %arg4[%c1, %c0_11, %c0_12] : memref<5x230x160xf32, #tpu.memory_space<vmem>>, vector<1x230x160xf32>
    %26 = vector.shape_cast %25 : vector<1x230x160xf32> to vector<230x160xf32>
    %cst_13 = arith.constant dense<0.000000e+00> : vector<64x160xf32>
    %27 = tpu.matmul %24, %26, %cst_13 {dimension_numbers = #tpu.dot_dimension_numbers<[1], [0], [0], [1], [0, 0, 1, 1], [], []>} : vector<64x230xf32>, vector<230x160xf32>, vector<64x160xf32> -> vector<64x160xf32>
    %28 = arith.addf %22, %27 : vector<64x160xf32>
    %29 = vector.extract_strided_slice %17 {offsets = [0, 2, 0], sizes = [8, 8, 230], strides = [1, 1, 1]} : vector<8x16x230xf32> to vector<8x8x230xf32>
    %30 = vector.shape_cast %29 : vector<8x8x230xf32> to vector<64x230xf32>
    %c2 = arith.constant 2 : index
    %c0_14 = arith.constant 0 : index
    %c0_15 = arith.constant 0 : index
    %31 = vector.load %arg4[%c2, %c0_14, %c0_15] : memref<5x230x160xf32, #tpu.memory_space<vmem>>, vector<1x230x160xf32>
    %32 = vector.shape_cast %31 : vector<1x230x160xf32> to vector<230x160xf32>
    %cst_16 = arith.constant dense<0.000000e+00> : vector<64x160xf32>
    %33 = tpu.matmul %30, %32, %cst_16 {dimension_numbers = #tpu.dot_dimension_numbers<[1], [0], [0], [1], [0, 0, 1, 1], [], []>} : vector<64x230xf32>, vector<230x160xf32>, vector<64x160xf32> -> vector<64x160xf32>
    %34 = arith.addf %28, %33 : vector<64x160xf32>
    %35 = vector.extract_strided_slice %17 {offsets = [0, 3, 0], sizes = [8, 8, 230], strides = [1, 1, 1]} : vector<8x16x230xf32> to vector<8x8x230xf32>
    %36 = vector.shape_cast %35 : vector<8x8x230xf32> to vector<64x230xf32>
    %c3 = arith.constant 3 : index
    %c0_17 = arith.constant 0 : index
    %c0_18 = arith.constant 0 : index
    %37 = vector.load %arg4[%c3, %c0_17, %c0_18] : memref<5x230x160xf32, #tpu.memory_space<vmem>>, vector<1x230x160xf32>
    %38 = vector.shape_cast %37 : vector<1x230x160xf32> to vector<230x160xf32>
    %cst_19 = arith.constant dense<0.000000e+00> : vector<64x160xf32>
    %39 = tpu.matmul %36, %38, %cst_19 {dimension_numbers = #tpu.dot_dimension_numbers<[1], [0], [0], [1], [0, 0, 1, 1], [], []>} : vector<64x230xf32>, vector<230x160xf32>, vector<64x160xf32> -> vector<64x160xf32>
    %40 = arith.addf %34, %39 : vector<64x160xf32>
    %41 = vector.extract_strided_slice %17 {offsets = [0, 4, 0], sizes = [8, 8, 230], strides = [1, 1, 1]} : vector<8x16x230xf32> to vector<8x8x230xf32>
    %42 = vector.shape_cast %41 : vector<8x8x230xf32> to vector<64x230xf32>
    %c4 = arith.constant 4 : index
    %c0_20 = arith.constant 0 : index
    %c0_21 = arith.constant 0 : index
    %43 = vector.load %arg4[%c4, %c0_20, %c0_21] : memref<5x230x160xf32, #tpu.memory_space<vmem>>, vector<1x230x160xf32>
    %44 = vector.shape_cast %43 : vector<1x230x160xf32> to vector<230x160xf32>
    %cst_22 = arith.constant dense<0.000000e+00> : vector<64x160xf32>
    %45 = tpu.matmul %42, %44, %cst_22 {dimension_numbers = #tpu.dot_dimension_numbers<[1], [0], [0], [1], [0, 0, 1, 1], [], []>} : vector<64x230xf32>, vector<230x160xf32>, vector<64x160xf32> -> vector<64x160xf32>
    %46 = arith.addf %40, %45 : vector<64x160xf32>
    %47 = vector.extract_strided_slice %46 {offsets = [0, 0], sizes = [64, 140], strides = [1, 1]} : vector<64x160xf32> to vector<64x140xf32>
    %48 = vector.extract_strided_slice %46 {offsets = [0, 20], sizes = [64, 140], strides = [1, 1]} : vector<64x160xf32> to vector<64x140xf32>
    %49 = arith.maximumf %47, %48 : vector<64x140xf32>
    %c0_23 = arith.constant 0 : index
    %c0_24 = arith.constant 0 : index
    %50 = vector.load %arg5[%c0_23, %c0_24] : memref<1x140xf32, #tpu.memory_space<vmem>>, vector<1x140xf32>
    %51 = vector.broadcast %50 : vector<1x140xf32> to vector<64x140xf32>
    %52 = arith.addf %49, %51 : vector<64x140xf32>
    %cst_25 = arith.constant 0.000000e+00 : f32
    %53 = vector.broadcast %cst_25 : f32 to vector<64x140xf32>
    %54 = arith.maximumf %52, %53 : vector<64x140xf32>
    %55 = vector.shape_cast %54 : vector<64x140xf32> to vector<8x8x140xf32>
    %c0_26 = arith.constant 0 : index
    %c0_27 = arith.constant 0 : index
    %56 = vector.load %arg7[%c0_26, %c0_27] : memref<1x50xf32, #tpu.memory_space<vmem>>, vector<1x50xf32>
    %57 = vector.extract_strided_slice %55 {offsets = [0, 0, 0], sizes = [8, 1, 140], strides = [1, 1, 1]} : vector<8x8x140xf32> to vector<8x1x140xf32>
    %58 = vector.shape_cast %57 : vector<8x1x140xf32> to vector<8x140xf32>
    %59 = vector.extract_strided_slice %55 {offsets = [0, 1, 0], sizes = [8, 1, 140], strides = [1, 1, 1]} : vector<8x8x140xf32> to vector<8x1x140xf32>
    %60 = vector.shape_cast %59 : vector<8x1x140xf32> to vector<8x140xf32>
    %61 = arith.maximumf %58, %60 : vector<8x140xf32>
    %c0_28 = arith.constant 0 : index
    %c0_29 = arith.constant 0 : index
    %c0_30 = arith.constant 0 : index
    %62 = vector.load %arg6[%c0_28, %c0_29, %c0_30] : memref<4x140x50xf32, #tpu.memory_space<vmem>>, vector<1x140x50xf32>
    %63 = vector.shape_cast %62 : vector<1x140x50xf32> to vector<140x50xf32>
    %cst_31 = arith.constant dense<0.000000e+00> : vector<8x50xf32>
    %64 = tpu.matmul %61, %63, %cst_31 {dimension_numbers = #tpu.dot_dimension_numbers<[1], [0], [0], [1], [0, 0, 1, 1], [], []>} : vector<8x140xf32>, vector<140x50xf32>, vector<8x50xf32> -> vector<8x50xf32>
    %65 = vector.broadcast %56 : vector<1x50xf32> to vector<8x50xf32>
    %66 = arith.addf %65, %64 : vector<8x50xf32>
    %67 = vector.extract_strided_slice %55 {offsets = [0, 2, 0], sizes = [8, 1, 140], strides = [1, 1, 1]} : vector<8x8x140xf32> to vector<8x1x140xf32>
    %68 = vector.shape_cast %67 : vector<8x1x140xf32> to vector<8x140xf32>
    %69 = vector.extract_strided_slice %55 {offsets = [0, 3, 0], sizes = [8, 1, 140], strides = [1, 1, 1]} : vector<8x8x140xf32> to vector<8x1x140xf32>
    %70 = vector.shape_cast %69 : vector<8x1x140xf32> to vector<8x140xf32>
    %71 = arith.maximumf %68, %70 : vector<8x140xf32>
    %c1_32 = arith.constant 1 : index
    %c0_33 = arith.constant 0 : index
    %c0_34 = arith.constant 0 : index
    %72 = vector.load %arg6[%c1_32, %c0_33, %c0_34] : memref<4x140x50xf32, #tpu.memory_space<vmem>>, vector<1x140x50xf32>
    %73 = vector.shape_cast %72 : vector<1x140x50xf32> to vector<140x50xf32>
    %cst_35 = arith.constant dense<0.000000e+00> : vector<8x50xf32>
    %74 = tpu.matmul %71, %73, %cst_35 {dimension_numbers = #tpu.dot_dimension_numbers<[1], [0], [0], [1], [0, 0, 1, 1], [], []>} : vector<8x140xf32>, vector<140x50xf32>, vector<8x50xf32> -> vector<8x50xf32>
    %75 = arith.addf %66, %74 : vector<8x50xf32>
    %76 = vector.extract_strided_slice %55 {offsets = [0, 4, 0], sizes = [8, 1, 140], strides = [1, 1, 1]} : vector<8x8x140xf32> to vector<8x1x140xf32>
    %77 = vector.shape_cast %76 : vector<8x1x140xf32> to vector<8x140xf32>
    %78 = vector.extract_strided_slice %55 {offsets = [0, 5, 0], sizes = [8, 1, 140], strides = [1, 1, 1]} : vector<8x8x140xf32> to vector<8x1x140xf32>
    %79 = vector.shape_cast %78 : vector<8x1x140xf32> to vector<8x140xf32>
    %80 = arith.maximumf %77, %79 : vector<8x140xf32>
    %c2_36 = arith.constant 2 : index
    %c0_37 = arith.constant 0 : index
    %c0_38 = arith.constant 0 : index
    %81 = vector.load %arg6[%c2_36, %c0_37, %c0_38] : memref<4x140x50xf32, #tpu.memory_space<vmem>>, vector<1x140x50xf32>
    %82 = vector.shape_cast %81 : vector<1x140x50xf32> to vector<140x50xf32>
    %cst_39 = arith.constant dense<0.000000e+00> : vector<8x50xf32>
    %83 = tpu.matmul %80, %82, %cst_39 {dimension_numbers = #tpu.dot_dimension_numbers<[1], [0], [0], [1], [0, 0, 1, 1], [], []>} : vector<8x140xf32>, vector<140x50xf32>, vector<8x50xf32> -> vector<8x50xf32>
    %84 = arith.addf %75, %83 : vector<8x50xf32>
    %85 = vector.extract_strided_slice %55 {offsets = [0, 6, 0], sizes = [8, 1, 140], strides = [1, 1, 1]} : vector<8x8x140xf32> to vector<8x1x140xf32>
    %86 = vector.shape_cast %85 : vector<8x1x140xf32> to vector<8x140xf32>
    %87 = vector.extract_strided_slice %55 {offsets = [0, 7, 0], sizes = [8, 1, 140], strides = [1, 1, 1]} : vector<8x8x140xf32> to vector<8x1x140xf32>
    %88 = vector.shape_cast %87 : vector<8x1x140xf32> to vector<8x140xf32>
    %89 = arith.maximumf %86, %88 : vector<8x140xf32>
    %c3_40 = arith.constant 3 : index
    %c0_41 = arith.constant 0 : index
    %c0_42 = arith.constant 0 : index
    %90 = vector.load %arg6[%c3_40, %c0_41, %c0_42] : memref<4x140x50xf32, #tpu.memory_space<vmem>>, vector<1x140x50xf32>
    %91 = vector.shape_cast %90 : vector<1x140x50xf32> to vector<140x50xf32>
    %cst_43 = arith.constant dense<0.000000e+00> : vector<8x50xf32>
    %92 = tpu.matmul %89, %91, %cst_43 {dimension_numbers = #tpu.dot_dimension_numbers<[1], [0], [0], [1], [0, 0, 1, 1], [], []>} : vector<8x140xf32>, vector<140x50xf32>, vector<8x50xf32> -> vector<8x50xf32>
    %93 = arith.addf %84, %92 : vector<8x50xf32>
    %cst_44 = arith.constant 0.000000e+00 : f32
    %94 = vector.broadcast %cst_44 : f32 to vector<8x50xf32>
    %95 = arith.maximumf %93, %94 : vector<8x50xf32>
    %c0_45 = arith.constant 0 : index
    %c0_46 = arith.constant 0 : index
    %96 = vector.load %arg8[%c0_45, %c0_46] : memref<50x128xf32, #tpu.memory_space<vmem>>, vector<50x128xf32>
    %cst_47 = arith.constant dense<0.000000e+00> : vector<8x128xf32>
    %97 = tpu.matmul %95, %96, %cst_47 {dimension_numbers = #tpu.dot_dimension_numbers<[1], [0], [0], [1], [0, 0, 1, 1], [], []>} : vector<8x50xf32>, vector<50x128xf32>, vector<8x128xf32> -> vector<8x128xf32>
    %c0_48 = arith.constant 0 : index
    %c0_49 = arith.constant 0 : index
    %98 = vector.load %arg9[%c0_48, %c0_49] : memref<1x128xf32, #tpu.memory_space<vmem>>, vector<1x128xf32>
    %99 = vector.broadcast %98 : vector<1x128xf32> to vector<8x128xf32>
    %100 = arith.addf %97, %99 : vector<8x128xf32>
    %cst_50 = arith.constant dense<0xFF800000> : vector<8xf32>
    %101 = vector.multi_reduction <maximumf>, %100, %cst_50 [1] : vector<8x128xf32> to vector<8xf32>
    %102 = vector.shape_cast %101 : vector<8xf32> to vector<8x1xf32>
    %103 = vector.broadcast %102 : vector<8x1xf32> to vector<8x128xf32>
    %104 = arith.subf %100, %103 : vector<8x128xf32>
    %105 = math.exp %104 : vector<8x128xf32>
    %cst_51 = arith.constant dense<0.000000e+00> : vector<8xf32>
    %106 = vector.multi_reduction <add>, %105, %cst_51 [1] : vector<8x128xf32> to vector<8xf32>
    %107 = vector.shape_cast %106 : vector<8xf32> to vector<8x1xf32>
    %108 = math.log %107 : vector<8x1xf32>
    %109 = vector.broadcast %102 : vector<8x1xf32> to vector<8x128xf32>
    %110 = arith.subf %100, %109 : vector<8x128xf32>
    %111 = vector.broadcast %108 : vector<8x1xf32> to vector<8x128xf32>
    %112 = arith.subf %110, %111 : vector<8x128xf32>
    %c0_52 = arith.constant 0 : index
    %c0_53 = arith.constant 0 : index
    %113 = vector.load %arg10[%c0_52, %c0_53] : memref<8x128xf32, #tpu.memory_space<vmem>>, vector<8x128xf32>
    tpu.vector_store %arg10[%c0_52, %c0_53], %112 {strides = array<i32>} : memref<8x128xf32, #tpu.memory_space<vmem>>, vector<8x128xf32>,
    return
  }
  func.func @transform_0(%arg0: i32) -> (i32, i32, i32) {
    %c0_i32 = arith.constant 0 : i32
    %c0_i32_0 = arith.constant 0 : i32
    %c0_i32_1 = arith.constant 0 : i32
    return %arg0, %c0_i32, %c0_i32_0 : i32, i32, i32
  }
  func.func @transform_1(%arg0: i32) -> (i32, i32) {
    %c0_i32 = arith.constant 0 : i32
    %c0_i32_0 = arith.constant 0 : i32
    %c0_i32_1 = arith.constant 0 : i32
    return %c0_i32, %c0_i32_0 : i32, i32
  }
  func.func @transform_2(%arg0: i32) -> (i32, i32) {
    %c0_i32 = arith.constant 0 : i32
    %c0_i32_0 = arith.constant 0 : i32
    %c0_i32_1 = arith.constant 0 : i32
    return %c0_i32, %c0_i32_0 : i32, i32
  }
  func.func @transform_3(%arg0: i32) -> (i32, i32, i32) {
    %c0_i32 = arith.constant 0 : i32
    %c0_i32_0 = arith.constant 0 : i32
    %c0_i32_1 = arith.constant 0 : i32
    %c0_i32_2 = arith.constant 0 : i32
    return %c0_i32, %c0_i32_0, %c0_i32_1 : i32, i32, i32
  }
  func.func @transform_4(%arg0: i32) -> (i32, i32) {
    %c0_i32 = arith.constant 0 : i32
    %c0_i32_0 = arith.constant 0 : i32
    %c0_i32_1 = arith.constant 0 : i32
    return %c0_i32, %c0_i32_0 : i32, i32
  }
  func.func @transform_5(%arg0: i32) -> (i32, i32, i32) {
    %c0_i32 = arith.constant 0 : i32
    %c0_i32_0 = arith.constant 0 : i32
    %c0_i32_1 = arith.constant 0 : i32
    %c0_i32_2 = arith.constant 0 : i32
    return %c0_i32, %c0_i32_0, %c0_i32_1 : i32, i32, i32
  }
  func.func @transform_6(%arg0: i32) -> (i32, i32) {
    %c0_i32 = arith.constant 0 : i32
    %c0_i32_0 = arith.constant 0 : i32
    %c0_i32_1 = arith.constant 0 : i32
    return %c0_i32, %c0_i32_0 : i32, i32
  }
  func.func @transform_7(%arg0: i32) -> (i32, i32) {
    %c0_i32 = arith.constant 0 : i32
    %c0_i32_0 = arith.constant 0 : i32
    %c0_i32_1 = arith.constant 0 : i32
    return %c0_i32, %c0_i32_0 : i32, i32
  }
  func.func @transform_8(%arg0: i32) -> (i32, i32) {
    %c0_i32 = arith.constant 0 : i32
    %c0_i32_0 = arith.constant 0 : i32
    %c0_i32_1 = arith.constant 0 : i32
    return %c0_i32, %c0_i32_0 : i32, i32
  }
  func.func @transform_9(%arg0: i32) -> (i32, i32) {
    %c0_i32 = arith.constant 0 : i32
    %c0_i32_0 = arith.constant 0 : i32
    return %arg0, %c0_i32 : i32, i32
  }
}

</mosaic_0001>

<llo_original>
// kernel: net_forward.1
$region0: #{net_forward.1}
  #allocation0 [shape = 'u32[]', space=smem, size = 0x4, offset = 0x4, fixed_abs, tag = 'smem constant byte address 0x4 - core index']
  #allocation1 [shape = 'u32[144,128]{1,0:T(1,128)}', space=vmem, size = 0x12000, scoped, tag = 'internal scratch']
  %s0 = inlined_call_operand.vmem [shape: f32[8,32,140], index: 0, kind: input, shape index: {}]
  %s1 = inlined_call_operand.vmem [shape: f32[140,240], index: 1, kind: input, shape index: {}]
  %s2 = inlined_call_operand.vmem [shape: f32[1,230], index: 2, kind: input, shape index: {}]
  %s3 = inlined_call_operand.vmem [shape: f32[5,230,160], index: 3, kind: input, shape index: {}]
  %s4 = inlined_call_operand.vmem [shape: f32[1,140], index: 4, kind: input, shape index: {}]
  %s5 = inlined_call_operand.vmem [shape: f32[4,140,50], index: 5, kind: input, shape index: {}]
  %s6 = inlined_call_operand.vmem [shape: f32[1,50], index: 6, kind: input, shape index: {}]
  %s7 = inlined_call_operand.vmem [shape: f32[50,128], index: 7, kind: input, shape index: {}]
  %s8 = inlined_call_operand.vmem [shape: f32[1,128], index: 8, kind: input, shape index: {}]
  %s9 = inlined_call_operand.vmem [shape: f32[8,128], index: 9, kind: output, shape index: {}]
  %s10 = sld [smem:[#allocation0]]
  $region46: #{net_forward.1} parent=0
    _
  %s12 = ssub.s32 1, %s10
  %s13 = scalar_select 0, %s12, %s10
  // Predicated region
  $region2: #{net_forward.1} parent=0 // pred_check
    _
  $region3: #{net_forward.1} parent=0 // pred_check_branch
    %15 = sbr.rel (0) target = $region5
  $region4: #{net_forward.1} parent=0 // pred_region
    _
  $region5: #{net_forward.1} parent=0 // pred_fallthru
    _
  // Predicated region
  $region6: #{net_forward.1} parent=0 // pred_check
    _
  $region7: #{net_forward.1} parent=0 // pred_check_branch
    %17 = sbr.rel (0) target = $region9
  $region8: #{net_forward.1} parent=0 // pred_region
    _
  $region9: #{net_forward.1} parent=0 // pred_fallthru
    _
  // Predicated region
  $region10: #{net_forward.1} parent=0 // pred_check
    _
  $region11: #{net_forward.1} parent=0 // pred_check_branch
    %19 = sbr.rel (0) target = $region13
  $region12: #{net_forward.1} parent=0 // pred_region
    _
  $region13: #{net_forward.1} parent=0 // pred_fallthru
    _
  // Predicated region
  $region14: #{net_forward.1} parent=0 // pred_check
    _
  $region15: #{net_forward.1} parent=0 // pred_check_branch
    %21 = sbr.rel (0) target = $region17
  $region16: #{net_forward.1} parent=0 // pred_region
    _
  $region17: #{net_forward.1} parent=0 // pred_fallthru
    _
  // Predicated region
  $region18: #{net_forward.1} parent=0 // pred_check
    _
  $region19: #{net_forward.1} parent=0 // pred_check_branch
    %23 = sbr.rel (0) target = $region21
  $region20: #{net_forward.1} parent=0 // pred_region
    _
  $region21: #{net_forward.1} parent=0 // pred_fallthru
    _
  // Predicated region
  $region22: #{net_forward.1} parent=0 // pred_check
    _
  $region23: #{net_forward.1} parent=0 // pred_check_branch
    %25 = sbr.rel (0) target = $region25
  $region24: #{net_forward.1} parent=0 // pred_region
    _
  $region25: #{net_forward.1} parent=0 // pred_fallthru
    _
  // Predicated region
  $region26: #{net_forward.1} parent=0 // pred_check
    _
  $region27: #{net_forward.1} parent=0 // pred_check_branch
    %27 = sbr.rel (0) target = $region29
  $region28: #{net_forward.1} parent=0 // pred_region
    _
  $region29: #{net_forward.1} parent=0 // pred_fallthru
    _
  // Predicated region
  $region30: #{net_forward.1} parent=0 // pred_check
    _
  $region31: #{net_forward.1} parent=0 // pred_check_branch
    %29 = sbr.rel (0) target = $region33
  $region32: #{net_forward.1} parent=0 // pred_region
    _
  $region33: #{net_forward.1} parent=0 // pred_fallthru
    _
  // Predicated region
  $region34: #{net_forward.1} parent=0 // pred_check
    _
  $region35: #{net_forward.1} parent=0 // pred_check_branch
    %31 = sbr.rel (0) target = $region37
  $region36: #{net_forward.1} parent=0 // pred_region
    _
  $region37: #{net_forward.1} parent=0 // pred_fallthru
    _
  %v32 = vld [vmem:[%s0] sm:$0xff]
  %v33 = vld [vmem:[%s0 + $0x8] sm:$0xff]
  %v34 = vld [vmem:[%s0 + $0x10] sm:$0xff]
  %v35 = vld [vmem:[%s0 + $0x18] sm:$0xff]
  %v36 = vld [vmem:[%s0 + $0x20] sm:$0xff]
  %v37 = vld [vmem:[%s0 + $0x28] sm:$0xff]
  %v38 = vld [vmem:[%s0 + $0x30] sm:$0xff]
  %v39 = vld [vmem:[%s0 + $0x38] sm:$0xff]
  %v40 = vld [vmem:[%s0 + $0x40] sm:$0xff]
  %v41 = vld [vmem:[%s0 + $0x48] sm:$0xff]
  %v42 = vld [vmem:[%s0 + $0x50] sm:$0xff]
  %v43 = vld [vmem:[%s0 + $0x58] sm:$0xff]
  %v44 = vld [vmem:[%s0 + $0x60] sm:$0xff]
  %v45 = vld [vmem:[%s0 + $0x68] sm:$0xff]
  %v46 = vld [vmem:[%s0 + $0x70] sm:$0xff]
  %v47 = vld [vmem:[%s0 + $0x78] sm:$0xff]
  %v48 = vld [vmem:[%s0 + $0x80] sm:$0xff]
  %v49 = vld [vmem:[%s0 + $0x88] sm:$0xff]
  %v50 = vld [vmem:[%s0 + $0x90] sm:$0xff]
  %v51 = vld [vmem:[%s0 + $0x98] sm:$0xff]
  %v52 = vld [vmem:[%s0 + $0xa0] sm:$0xff]
  %v53 = vld [vmem:[%s0 + $0xa8] sm:$0xff]
  %v54 = vld [vmem:[%s0 + $0xb0] sm:$0xff]
  %v55 = vld [vmem:[%s0 + $0xb8] sm:$0xff]
  %v56 = vld [vmem:[%s0 + $0xc0] sm:$0xff]
  %v57 = vld [vmem:[%s0 + $0xc8] sm:$0xff]
  %v58 = vld [vmem:[%s0 + $0xd0] sm:$0xff]
  %v59 = vld [vmem:[%s0 + $0xd8] sm:$0xff]
  %v60 = vld [vmem:[%s0 + $0xe0] sm:$0xff]
  %v61 = vld [vmem:[%s0 + $0xe8] sm:$0xff]
  %v62 = vld [vmem:[%s0 + $0xf0] sm:$0xff]
  %v63 = vld [vmem:[%s0 + $0xf8] sm:$0xff]
  %v64 = vld [vmem:[%s0 + $0x100] sm:$0xff]
  %v65 = vld [vmem:[%s0 + $0x108] sm:$0xff]
  %v66 = vld [vmem:[%s0 + $0x110] sm:$0xff]
  %v67 = vld [vmem:[%s0 + $0x118] sm:$0xff]
  %v68 = vld [vmem:[%s0 + $0x120] sm:$0xff]
  %v69 = vld [vmem:[%s0 + $0x128] sm:$0xff]
  %v70 = vld [vmem:[%s0 + $0x130] sm:$0xff]
  %v71 = vld [vmem:[%s0 + $0x138] sm:$0xff]
  %v72 = vld [vmem:[%s0 + $0x140] sm:$0xff]
  %v73 = vld [vmem:[%s0 + $0x148] sm:$0xff]
  %v74 = vld [vmem:[%s0 + $0x150] sm:$0xff]
  %v75 = vld [vmem:[%s0 + $0x158] sm:$0xff]
  %v76 = vld [vmem:[%s0 + $0x160] sm:$0xff]
  %v77 = vld [vmem:[%s0 + $0x168] sm:$0xff]
  %v78 = vld [vmem:[%s0 + $0x170] sm:$0xff]
  %v79 = vld [vmem:[%s0 + $0x178] sm:$0xff]
  %v80 = vld [vmem:[%s0 + $0x180] sm:$0xff]
  %v81 = vld [vmem:[%s0 + $0x188] sm:$0xff]
  %v82 = vld [vmem:[%s0 + $0x190] sm:$0xff]
  %v83 = vld [vmem:[%s0 + $0x198] sm:$0xff]
  %v84 = vld [vmem:[%s0 + $0x1a0] sm:$0xff]
  %v85 = vld [vmem:[%s0 + $0x1a8] sm:$0xff]
  %v86 = vld [vmem:[%s0 + $0x1b0] sm:$0xff]
  %v87 = vld [vmem:[%s0 + $0x1b8] sm:$0xff]
  %v88 = vld [vmem:[%s0 + $0x1c0] sm:$0xff]
  %v89 = vld [vmem:[%s0 + $0x1c8] sm:$0xff]
  %v90 = vld [vmem:[%s0 + $0x1d0] sm:$0xff]
  %v91 = vld [vmem:[%s0 + $0x1d8] sm:$0xff]
  %v92 = vld [vmem:[%s0 + $0x1e0] sm:$0xff]
  %v93 = vld [vmem:[%s0 + $0x1e8] sm:$0xff]
  %v94 = vld [vmem:[%s0 + $0x1f0] sm:$0xff]
  %v95 = vld [vmem:[%s0 + $0x1f8] sm:$0xff]
  %v96 = vld [vmem:[%s1] sm:$0xff]
  %v97 = vld [vmem:[%s1 + $0x8] sm:$0xff]
  %v98 = vld [vmem:[%s1 + $0x10] sm:$0xff]
  %v99 = vld [vmem:[%s1 + $0x18] sm:$0xff]
  %v100 = vld [vmem:[%s1 + $0x20] sm:$0xff]
  %v101 = vld [vmem:[%s1 + $0x28] sm:$0xff]
  %v102 = vld [vmem:[%s1 + $0x30] sm:$0xff]
  %v103 = vld [vmem:[%s1 + $0x38] sm:$0xff]
  %v104 = vld [vmem:[%s1 + $0x40] sm:$0xff]
  %v105 = vld [vmem:[%s1 + $0x48] sm:$0xff]
  %v106 = vld [vmem:[%s1 + $0x50] sm:$0xff]
  %v107 = vld [vmem:[%s1 + $0x58] sm:$0xff]
  %v108 = vld [vmem:[%s1 + $0x60] sm:$0xff]
  %v109 = vld [vmem:[%s1 + $0x68] sm:$0xff]
  %v110 = vld [vmem:[%s1 + $0x70] sm:$0xff]
  %v111 = vld [vmem:[%s1 + $0x78] sm:$0xff]
  %v112 = vld [vmem:[%s1 + $0x80] sm:$0xff]
  %v113 = vld [vmem:[%s1 + $0x88] sm:$0xff]
  %v114 = vld [vmem:[%s1 + $0x90] sm:$0xff]
  %v115 = vld [vmem:[%s1 + $0x98] sm:$0xff]
  %v116 = vld [vmem:[%s1 + $0xa0] sm:$0xff]
  %v117 = vld [vmem:[%s1 + $0xa8] sm:$0xff]
  %v118 = vld [vmem:[%s1 + $0xb0] sm:$0xff]
  %v119 = vld [vmem:[%s1 + $0xb8] sm:$0xff]
  %v120 = vld [vmem:[%s1 + $0xc0] sm:$0xff]
  %v121 = vld [vmem:[%s1 + $0xc8] sm:$0xff]
  %v122 = vld [vmem:[%s1 + $0xd0] sm:$0xff]
  %v123 = vld [vmem:[%s1 + $0xd8] sm:$0xff]
  %v124 = vld [vmem:[%s1 + $0xe0] sm:$0xff]
  %v125 = vld [vmem:[%s1 + $0xe8] sm:$0xff]
  %v126 = vld [vmem:[%s1 + $0xf0] sm:$0xff]
  %v127 = vld [vmem:[%s1 + $0xf8] sm:$0xff]
  %v128 = vld [vmem:[%s1 + $0x100] sm:$0xff]
  %v129 = vld [vmem:[%s1 + $0x108] sm:$0xff]
  %v130 = vld [vmem:[%s1 + $0x110] sm:$0xf]
  %v131 = vld [vmem:[%s1 + $0x118] sm:$0xf]
  %vm132 = vcmask 97280
  %v134 = vsel %vm132, %v33, 0
  %v137 = vsel %vm132, %v35, 0
  %v140 = vsel %vm132, %v37, 0
  %v143 = vsel %vm132, %v39, 0
  %v146 = vsel %vm132, %v41, 0
  %v149 = vsel %vm132, %v43, 0
  %v152 = vsel %vm132, %v45, 0
  %v155 = vsel %vm132, %v47, 0
  %v158 = vsel %vm132, %v49, 0
  %v161 = vsel %vm132, %v51, 0
  %v164 = vsel %vm132, %v53, 0
  %v167 = vsel %vm132, %v55, 0
  %v170 = vsel %vm132, %v57, 0
  %v173 = vsel %vm132, %v59, 0
  %v176 = vsel %vm132, %v61, 0
  %v179 = vsel %vm132, %v63, 0
  %v182 = vsel %vm132, %v65, 0
  %v185 = vsel %vm132, %v67, 0
  %v188 = vsel %vm132, %v69, 0
  %v191 = vsel %vm132, %v71, 0
  %v194 = vsel %vm132, %v73, 0
  %v197 = vsel %vm132, %v75, 0
  %v200 = vsel %vm132, %v77, 0
  %v203 = vsel %vm132, %v79, 0
  %v206 = vsel %vm132, %v81, 0
  %v209 = vsel %vm132, %v83, 0
  %v212 = vsel %vm132, %v85, 0
  %v215 = vsel %vm132, %v87, 0
  %v218 = vsel %vm132, %v89, 0
  %v221 = vsel %vm132, %v91, 0
  %v224 = vsel %vm132, %v93, 0
  %v227 = vsel %vm132, %v95, 0
  %vm229 = vcmask 1043456
  %v231 = vsel %vm229, %v130, 0
  %v234 = vsel %vm229, %v131, 0
  %236 = vmatprep.subr.mxu0 %v97
  %237 = vmatpush1.msra.mxu0 %v96
  %238 = vmatprep.subr.mxu0 %v99
  %239 = vmatpush1.msra.mxu0 %v98
  %240 = vmatprep.subr.mxu0 %v101
  %241 = vmatpush1.msra.mxu0 %v100
  %242 = vmatprep.subr.mxu0 %v103
  %243 = vmatpush1.msra.mxu0 %v102
  %244 = vmatprep.subr.mxu0 %v105
  %245 = vmatpush1.msra.mxu0 %v104
  %246 = vmatprep.subr.mxu0 %v107
  %247 = vmatpush1.msra.mxu0 %v106
  %248 = vmatprep.subr.mxu0 %v109
  %249 = vmatpush1.msra.mxu0 %v108
  %250 = vmatprep.subr.mxu0 %v111
  %251 = vmatpush1.msra.mxu0 %v110
  %252 = vmatprep.subr.mxu0 %v113
  %253 = vmatpush1.msra.mxu0 %v112
  %254 = vmatprep.subr.mxu0 %v115
  %255 = vmatpush1.msra.mxu0 %v114
  %256 = vmatprep.subr.mxu0 %v117
  %257 = vmatpush1.msra.mxu0 %v116
  %258 = vmatprep.subr.mxu0 %v119
  %259 = vmatpush1.msra.mxu0 %v118
  %260 = vmatprep.subr.mxu0 %v121
  %261 = vmatpush1.msra.mxu0 %v120
  %262 = vmatprep.subr.mxu0 %v123
  %263 = vmatpush1.msra.mxu0 %v122
  %264 = vmatprep.subr.mxu0 %v125
  %265 = vmatpush1.msra.mxu0 %v124
  %266 = vmatprep.subr.mxu0 %v127
  %267 = vmatpush1.msra.mxu0 %v126
  %268 = vmatprep.subr.mxu0 %v129
  %269 = vmatpush1.msra.mxu0 %v128
  %270 = vmatprep.subr.mxu0 %v234
  %271 = vmatpush1.msra.mxu0 %v231
  %272 = vmatprep.subr.mxu0 0.0
  %273 = vmatpush1.msra.mxu0 0.0
  %274 = vmatprep.subr.mxu0 0.0
  %275 = vmatpush1.msra.mxu0 0.0
  %276 = vmatprep.subr.mxu0 0.0
  %277 = vmatpush1.msra.mxu0 0.0
  %278 = vmatprep.subr.mxu0 0.0
  %279 = vmatpush1.msra.mxu0 0.0
  %280 = vmatprep.subr.mxu0 0.0
  %281 = vmatpush1.msra.mxu0 0.0
  %282 = vmatprep.subr.mxu0 0.0
  %283 = vmatpush1.msra.mxu0 0.0
  %284 = vmatprep.subr.mxu0 0.0
  %285 = vmatpush1.msra.mxu0 0.0
  %286 = vmatprep.subr.mxu0 0.0
  %287 = vmatpush1.msra.mxu0 0.0
  %288 = vmatprep.subr.mxu0 0.0
  %289 = vmatpush1.msra.mxu0 0.0
  %290 = vmatprep.subr.mxu0 0.0
  %291 = vmatpush1.msra.mxu0 0.0
  %292 = vmatprep.subr.mxu0 0.0
  %293 = vmatpush1.msra.mxu0 0.0
  %294 = vmatprep.subr.mxu0 0.0
  %295 = vmatpush1.msra.mxu0 0.0
  %296 = vmatprep.subr.mxu0 0.0
  %297 = vmatpush1.msra.mxu0 0.0
  %298 = vmatprep.subr.mxu0 0.0
  %299 = vmatpush1.msra.mxu0 0.0
  %300 = vmatprep.mubr.f32.mxu0 %v134
  %301 = vmatmul.mubr.f32.gmra.mrb[0].mxu0 %v32
  %v302 = vpop.f32.mrb[0].mxu0
  %v303 = vadd.f32 0.0, %v302
  %v304 = vpop.f32.mrb[0].mxu0
  %v305 = vadd.f32 0.0, %v304
  %306 = vmatprep.mubr.f32.mxu0 %v137
  %307 = vmatmul.mubr.f32.gmra.mrb[0].mxu0 %v34
  %v308 = vpop.f32.mrb[0].mxu0
  %v309 = vadd.f32 0.0, %v308
  %v310 = vpop.f32.mrb[0].mxu0
  %v311 = vadd.f32 0.0, %v310
  %312 = vmatprep.mubr.f32.mxu0 %v140
  %313 = vmatmul.mubr.f32.gmra.mrb[0].mxu0 %v36
  %v314 = vpop.f32.mrb[0].mxu0
  %v315 = vadd.f32 0.0, %v314
  %v316 = vpop.f32.mrb[0].mxu0
  %v317 = vadd.f32 0.0, %v316
  %318 = vmatprep.mubr.f32.mxu0 %v143
  %319 = vmatmul.mubr.f32.gmra.mrb[0].mxu0 %v38
  %v320 = vpop.f32.mrb[0].mxu0
  %v321 = vadd.f32 0.0, %v320
  %v322 = vpop.f32.mrb[0].mxu0
  %v323 = vadd.f32 0.0, %v322
  %324 = vmatprep.mubr.f32.mxu0 %v146
  %325 = vmatmul.mubr.f32.gmra.mrb[0].mxu0 %v40
  %v326 = vpop.f32.mrb[0].mxu0
  %v327 = vadd.f32 0.0, %v326
  %v328 = vpop.f32.mrb[0].mxu0
  %v329 = vadd.f32 0.0, %v328
  %330 = vmatprep.mubr.f32.mxu0 %v149
  %331 = vmatmul.mubr.f32.gmra.mrb[0].mxu0 %v42
  %v332 = vpop.f32.mrb[0].mxu0
  %v333 = vadd.f32 0.0, %v332
  %v334 = vpop.f32.mrb[0].mxu0
  %v335 = vadd.f32 0.0, %v334
  %336 = vmatprep.mubr.f32.mxu0 %v152
  %337 = vmatmul.mubr.f32.gmra.mrb[0].mxu0 %v44
  %v338 = vpop.f32.mrb[0].mxu0
  %v339 = vadd.f32 0.0, %v338
  %v340 = vpop.f32.mrb[0].mxu0
  %v341 = vadd.f32 0.0, %v340
  %342 = vmatprep.mubr.f32.mxu0 %v155
  %343 = vmatmul.mubr.f32.gmra.mrb[0].mxu0 %v46
  %v344 = vpop.f32.mrb[0].mxu0
  %v345 = vadd.f32 0.0, %v344
  %v346 = vpop.f32.mrb[0].mxu0
  %v347 = vadd.f32 0.0, %v346
  %348 = vmatprep.mubr.f32.mxu0 %v158
  %349 = vmatmul.mubr.f32.gmra.mrb[0].mxu0 %v48
  %v350 = vpop.f32.mrb[0].mxu0
  %v351 = vadd.f32 0.0, %v350
  %v352 = vpop.f32.mrb[0].mxu0
  %v353 = vadd.f32 0.0, %v352
  %354 = vmatprep.mubr.f32.mxu0 %v161
  %355 = vmatmul.mubr.f32.gmra.mrb[0].mxu0 %v50
  %v356 = vpop.f32.mrb[0].mxu0
  %v357 = vadd.f32 0.0, %v356
  %v358 = vpop.f32.mrb[0].mxu0
  %v359 = vadd.f32 0.0, %v358
  %360 = vmatprep.mubr.f32.mxu0 %v164
  %361 = vmatmul.mubr.f32.gmra.mrb[0].mxu0 %v52
  %v362 = vpop.f32.mrb[0].mxu0
  %v363 = vadd.f32 0.0, %v362
  %v364 = vpop.f32.mrb[0].mxu0
  %v365 = vadd.f32 0.0, %v364
  %366 = vmatprep.mubr.f32.mxu0 %v167
  %367 = vmatmul.mubr.f32.gmra.mrb[0].mxu0 %v54
  %v368 = vpop.f32.mrb[0].mxu0
  %v369 = vadd.f32 0.0, %v368
  %v370 = vpop.f32.mrb[0].mxu0
  %v371 = vadd.f32 0.0, %v370
  %372 = vmatprep.mubr.f32.mxu0 %v170
  %373 = vmatmul.mubr.f32.gmra.mrb[0].mxu0 %v56
  %v374 = vpop.f32.mrb[0].mxu0
  %v375 = vadd.f32 0.0, %v374
  %v376 = vpop.f32.mrb[0].mxu0
  %v377 = vadd.f32 0.0, %v376
  %378 = vmatprep.mubr.f32.mxu0 %v173
  %379 = vmatmul.mubr.f32.gmra.mrb[0].mxu0 %v58
  %v380 = vpop.f32.mrb[0].mxu0
  %v381 = vadd.f32 0.0, %v380
  %v382 = vpop.f32.mrb[0].mxu0
  %v383 = vadd.f32 0.0, %v382
  %384 = vmatprep.mubr.f32.mxu0 %v176
  %385 = vmatmul.mubr.f32.gmra.mrb[0].mxu0 %v60
  %v386 = vpop.f32.mrb[0].mxu0
  %v387 = vadd.f32 0.0, %v386
  %v388 = vpop.f32.mrb[0].mxu0
  %v389 = vadd.f32 0.0, %v388
  %390 = vmatprep.mubr.f32.mxu0 %v179
  %391 = vmatmul.mubr.f32.gmra.mrb[0].mxu0 %v62
  %v392 = vpop.f32.mrb[0].mxu0
  %v393 = vadd.f32 0.0, %v392
  %v394 = vpop.f32.mrb[0].mxu0
  %v395 = vadd.f32 0.0, %v394
  %396 = vmatprep.mubr.f32.mxu0 %v182
  %397 = vmatmul.mubr.f32.gmra.mrb[0].mxu0 %v64
  %v398 = vpop.f32.mrb[0].mxu0
  %v399 = vadd.f32 0.0, %v398
  %v400 = vpop.f32.mrb[0].mxu0
  %v401 = vadd.f32 0.0, %v400
  %402 = vmatprep.mubr.f32.mxu0 %v185
  %403 = vmatmul.mubr.f32.gmra.mrb[0].mxu0 %v66
  %v404 = vpop.f32.mrb[0].mxu0
  %v405 = vadd.f32 0.0, %v404
  %v406 = vpop.f32.mrb[0].mxu0
  %v407 = vadd.f32 0.0, %v406
  %408 = vmatprep.mubr.f32.mxu0 %v188
  %409 = vmatmul.mubr.f32.gmra.mrb[0].mxu0 %v68
  %v410 = vpop.f32.mrb[0].mxu0
  %v411 = vadd.f32 0.0, %v410
  %v412 = vpop.f32.mrb[0].mxu0
  %v413 = vadd.f32 0.0, %v412
  %414 = vmatprep.mubr.f32.mxu0 %v191
  %415 = vmatmul.mubr.f32.gmra.mrb[0].mxu0 %v70
  %v416 = vpop.f32.mrb[0].mxu0
  %v417 = vadd.f32 0.0, %v416
  %v418 = vpop.f32.mrb[0].mxu0
  %v419 = vadd.f32 0.0, %v418
  %420 = vmatprep.mubr.f32.mxu0 %v194
  %421 = vmatmul.mubr.f32.gmra.mrb[0].mxu0 %v72
  %v422 = vpop.f32.mrb[0].mxu0
  %v423 = vadd.f32 0.0, %v422
  %v424 = vpop.f32.mrb[0].mxu0
  %v425 = vadd.f32 0.0, %v424
  %426 = vmatprep.mubr.f32.mxu0 %v197
  %427 = vmatmul.mubr.f32.gmra.mrb[0].mxu0 %v74
  %v428 = vpop.f32.mrb[0].mxu0
  %v429 = vadd.f32 0.0, %v428
  %v430 = vpop.f32.mrb[0].mxu0
  %v431 = vadd.f32 0.0, %v430
  %432 = vmatprep.mubr.f32.mxu0 %v200
  %433 = vmatmul.mubr.f32.gmra.mrb[0].mxu0 %v76
  %v434 = vpop.f32.mrb[0].mxu0
  %v435 = vadd.f32 0.0, %v434
  %v436 = vpop.f32.mrb[0].mxu0
  %v437 = vadd.f32 0.0, %v436
  %438 = vmatprep.mubr.f32.mxu0 %v203
  %439 = vmatmul.mubr.f32.gmra.mrb[0].mxu0 %v78
  %v440 = vpop.f32.mrb[0].mxu0
  %v441 = vadd.f32 0.0, %v440
  %v442 = vpop.f32.mrb[0].mxu0
  %v443 = vadd.f32 0.0, %v442
  %444 = vmatprep.mubr.f32.mxu0 %v206
  %445 = vmatmul.mubr.f32.gmra.mrb[0].mxu0 %v80
  %v446 = vpop.f32.mrb[0].mxu0
  %v447 = vadd.f32 0.0, %v446
  %v448 = vpop.f32.mrb[0].mxu0
  %v449 = vadd.f32 0.0, %v448
  %450 = vmatprep.mubr.f32.mxu0 %v209
  %451 = vmatmul.mubr.f32.gmra.mrb[0].mxu0 %v82
  %v452 = vpop.f32.mrb[0].mxu0
  %v453 = vadd.f32 0.0, %v452
  %v454 = vpop.f32.mrb[0].mxu0
  %v455 = vadd.f32 0.0, %v454
  %456 = vmatprep.mubr.f32.mxu0 %v212
  %457 = vmatmul.mubr.f32.gmra.mrb[0].mxu0 %v84
  %v458 = vpop.f32.mrb[0].mxu0
  %v459 = vadd.f32 0.0, %v458
  %v460 = vpop.f32.mrb[0].mxu0
  %v461 = vadd.f32 0.0, %v460
  %462 = vmatprep.mubr.f32.mxu0 %v215
  %463 = vmatmul.mubr.f32.gmra.mrb[0].mxu0 %v86
  %v464 = vpop.f32.mrb[0].mxu0
  %v465 = vadd.f32 0.0, %v464
  %v466 = vpop.f32.mrb[0].mxu0
  %v467 = vadd.f32 0.0, %v466
  %468 = vmatprep.mubr.f32.mxu0 %v218
  %469 = vmatmul.mubr.f32.gmra.mrb[0].mxu0 %v88
  %v470 = vpop.f32.mrb[0].mxu0
  %v471 = vadd.f32 0.0, %v470
  %v472 = vpop.f32.mrb[0].mxu0
  %v473 = vadd.f32 0.0, %v472
  %474 = vmatprep.mubr.f32.mxu0 %v221
  %475 = vmatmul.mubr.f32.gmra.mrb[0].mxu0 %v90
  %v476 = vpop.f32.mrb[0].mxu0
  %v477 = vadd.f32 0.0, %v476
  %v478 = vpop.f32.mrb[0].mxu0
  %v479 = vadd.f32 0.0, %v478
  %480 = vmatprep.mubr.f32.mxu0 %v224
  %481 = vmatmul.mubr.f32.gmra.mrb[0].mxu0 %v92
  %v482 = vpop.f32.mrb[0].mxu0
  %v483 = vadd.f32 0.0, %v482
  %v484 = vpop.f32.mrb[0].mxu0
  %v485 = vadd.f32 0.0, %v484
  %486 = vmatprep.mubr.f32.mxu0 %v227
  %487 = vmatmul.mubr.f32.gmra.mrb[0].mxu0 %v94
  %v488 = vpop.f32.mrb[0].mxu0
  %v489 = vadd.f32 0.0, %v488
  %v490 = vpop.f32.mrb[0].mxu0
  %v491 = vadd.f32 0.0, %v490
  %492 = vdwg.mxu0
  %v493 = vmax.f32 %v303, %v315
  %v494 = vmax.f32 %v305, %v317
  %v495 = vmax.f32 %v309, %v321
  %v496 = vmax.f32 %v311, %v323
  %v497 = vmax.f32 %v327, %v339
  %v498 = vmax.f32 %v329, %v341
  %v499 = vmax.f32 %v333, %v345
  %v500 = vmax.f32 %v335, %v347
  %v501 = vmax.f32 %v351, %v363
  %v502 = vmax.f32 %v353, %v365
  %v503 = vmax.f32 %v357, %v369
  %v504 = vmax.f32 %v359, %v371
  %v505 = vmax.f32 %v375, %v387
  %v506 = vmax.f32 %v377, %v389
  %v507 = vmax.f32 %v381, %v393
  %v508 = vmax.f32 %v383, %v395
  %v509 = vmax.f32 %v399, %v411
  %v510 = vmax.f32 %v401, %v413
  %v511 = vmax.f32 %v405, %v417
  %v512 = vmax.f32 %v407, %v419
  %v513 = vmax.f32 %v423, %v435
  %v514 = vmax.f32 %v425, %v437
  %v515 = vmax.f32 %v429, %v441
  %v516 = vmax.f32 %v431, %v443
  %v517 = vmax.f32 %v447, %v459
  %v518 = vmax.f32 %v449, %v461
  %v519 = vmax.f32 %v453, %v465
  %v520 = vmax.f32 %v455, %v467
  %v521 = vmax.f32 %v471, %v483
  %v522 = vmax.f32 %v473, %v485
  %v523 = vmax.f32 %v477, %v489
  %v524 = vmax.f32 %v479, %v491
  %557 = vrot.lane.b32.xlu0 %v493, 118
  %v558 = vpop.permute.xlu0 %557
  %559 = vrot.lane.b32.xlu0 %v494, 118
  %v560 = vpop.permute.xlu0 %559
  %561 = vrot.lane.b32.xlu0 %v495, 118
  %v562 = vpop.permute.xlu0 %561
  %563 = vrot.lane.b32.xlu0 %v496, 118
  %v564 = vpop.permute.xlu0 %563
  %565 = vrot.lane.b32.xlu0 %v497, 118
  %v566 = vpop.permute.xlu0 %565
  %567 = vrot.lane.b32.xlu0 %v498, 118
  %v568 = vpop.permute.xlu0 %567
  %569 = vrot.lane.b32.xlu0 %v499, 118
  %v570 = vpop.permute.xlu0 %569
  %571 = vrot.lane.b32.xlu0 %v500, 118
  %v572 = vpop.permute.xlu0 %571
  %573 = vrot.lane.b32.xlu0 %v501, 118
  %v574 = vpop.permute.xlu0 %573
  %575 = vrot.lane.b32.xlu0 %v502, 118
  %v576 = vpop.permute.xlu0 %575
  %577 = vrot.lane.b32.xlu0 %v503, 118
  %v578 = vpop.permute.xlu0 %577
  %579 = vrot.lane.b32.xlu0 %v504, 118
  %v580 = vpop.permute.xlu0 %579
  %581 = vrot.lane.b32.xlu0 %v505, 118
  %v582 = vpop.permute.xlu0 %581
  %583 = vrot.lane.b32.xlu0 %v506, 118
  %v584 = vpop.permute.xlu0 %583
  %585 = vrot.lane.b32.xlu0 %v507, 118
  %v586 = vpop.permute.xlu0 %585
  %587 = vrot.lane.b32.xlu0 %v508, 118
  %v588 = vpop.permute.xlu0 %587
  %589 = vrot.lane.b32.xlu0 %v509, 118
  %v590 = vpop.permute.xlu0 %589
  %591 = vrot.lane.b32.xlu0 %v510, 118
  %v592 = vpop.permute.xlu0 %591
  %593 = vrot.lane.b32.xlu0 %v511, 118
  %v594 = vpop.permute.xlu0 %593
  %595 = vrot.lane.b32.xlu0 %v512, 118
  %v596 = vpop.permute.xlu0 %595
  %597 = vrot.lane.b32.xlu0 %v513, 118
  %v598 = vpop.permute.xlu0 %597
  %599 = vrot.lane.b32.xlu0 %v514, 118
  %v600 = vpop.permute.xlu0 %599
  %601 = vrot.lane.b32.xlu0 %v515, 118
  %v602 = vpop.permute.xlu0 %601
  %603 = vrot.lane.b32.xlu0 %v516, 118
  %v604 = vpop.permute.xlu0 %603
  %605 = vrot.lane.b32.xlu0 %v517, 118
  %v606 = vpop.permute.xlu0 %605
  %607 = vrot.lane.b32.xlu0 %v518, 118
  %v608 = vpop.permute.xlu0 %607
  %609 = vrot.lane.b32.xlu0 %v519, 118
  %v610 = vpop.permute.xlu0 %609
  %611 = vrot.lane.b32.xlu0 %v520, 118
  %v612 = vpop.permute.xlu0 %611
  %613 = vrot.lane.b32.xlu0 %v521, 118
  %v614 = vpop.permute.xlu0 %613
  %615 = vrot.lane.b32.xlu0 %v522, 118
  %v616 = vpop.permute.xlu0 %615
  %617 = vrot.lane.b32.xlu0 %v523, 118
  %v618 = vpop.permute.xlu0 %617
  %619 = vrot.lane.b32.xlu0 %v524, 118
  %v620 = vpop.permute.xlu0 %619
  %vm621 = vcmask 965632
  %v622 = vsel %vm621, %v558, %v560
  %v623 = vsel %vm621, %v562, %v564
  %v624 = vsel %vm621, %v566, %v568
  %v625 = vsel %vm621, %v570, %v572
  %v626 = vsel %vm621, %v574, %v576
  %v627 = vsel %vm621, %v578, %v580
  %v628 = vsel %vm621, %v582, %v584
  %v629 = vsel %vm621, %v586, %v588
  %v630 = vsel %vm621, %v590, %v592
  %v631 = vsel %vm621, %v594, %v596
  %v632 = vsel %vm621, %v598, %v600
  %v633 = vsel %vm621, %v602, %v604
  %v634 = vsel %vm621, %v606, %v608
  %v635 = vsel %vm621, %v610, %v612
  %v636 = vsel %vm621, %v614, %v616
  %v637 = vsel %vm621, %v618, %v620
  %v670 = vmax.f32 %v493, %v622
  %v671 = vmax.f32 %v494, %v560
  %v672 = vmax.f32 %v495, %v623
  %v673 = vmax.f32 %v496, %v564
  %v674 = vmax.f32 %v497, %v624
  %v675 = vmax.f32 %v498, %v568
  %v676 = vmax.f32 %v499, %v625
  %v677 = vmax.f32 %v500, %v572
  %v678 = vmax.f32 %v501, %v626
  %v679 = vmax.f32 %v502, %v576
  %v680 = vmax.f32 %v503, %v627
  %v681 = vmax.f32 %v504, %v580
  %v682 = vmax.f32 %v505, %v628
  %v683 = vmax.f32 %v506, %v584
  %v684 = vmax.f32 %v507, %v629
  %v685 = vmax.f32 %v508, %v588
  %v686 = vmax.f32 %v509, %v630
  %v687 = vmax.f32 %v510, %v592
  %v688 = vmax.f32 %v511, %v631
  %v689 = vmax.f32 %v512, %v596
  %v690 = vmax.f32 %v513, %v632
  %v691 = vmax.f32 %v514, %v600
  %v692 = vmax.f32 %v515, %v633
  %v693 = vmax.f32 %v516, %v604
  %v694 = vmax.f32 %v517, %v634
  %v695 = vmax.f32 %v518, %v608
  %v696 = vmax.f32 %v519, %v635
  %v697 = vmax.f32 %v520, %v612
  %v698 = vmax.f32 %v521, %v636
  %v699 = vmax.f32 %v522, %v616
  %v700 = vmax.f32 %v523, %v637
  %v701 = vmax.f32 %v524, %v620
  %v702 = vld [vmem:[%s2] sm:$0x3]
  %v704 = vlaneseq
  %v705 = vshrl.u32 %v704, 7
  %v706 = vsub.s32 0, %v705
  %v707 = vrot.slane %v702, %v706
  %v708 = vlaneseq
  %v709 = vshrl.u32 %v708, 7
  %v710 = vsub.s32 1, %v709
  %v711 = vrot.slane %v702, %v710
  %v714 = vadd.f32 %v670, %v707
  %v715 = vadd.f32 %v671, %v711
  %v716 = vadd.f32 %v672, %v707
  %v717 = vadd.f32 %v673, %v711
  %v718 = vadd.f32 %v674, %v707
  %v719 = vadd.f32 %v675, %v711
  %v720 = vadd.f32 %v676, %v707
  %v721 = vadd.f32 %v677, %v711
  %v722 = vadd.f32 %v678, %v707
  %v723 = vadd.f32 %v679, %v711
  %v724 = vadd.f32 %v680, %v707
  %v725 = vadd.f32 %v681, %v711
  %v726 = vadd.f32 %v682, %v707
  %v727 = vadd.f32 %v683, %v711
  %v728 = vadd.f32 %v684, %v707
  %v729 = vadd.f32 %v685, %v711
  %v730 = vadd.f32 %v686, %v707
  %v731 = vadd.f32 %v687, %v711
  %v732 = vadd.f32 %v688, %v707
  %v733 = vadd.f32 %v689, %v711
  %v734 = vadd.f32 %v690, %v707
  %v735 = vadd.f32 %v691, %v711
  %v736 = vadd.f32 %v692, %v707
  %v737 = vadd.f32 %v693, %v711
  %v738 = vadd.f32 %v694, %v707
  %v739 = vadd.f32 %v695, %v711
  %v740 = vadd.f32 %v696, %v707
  %v741 = vadd.f32 %v697, %v711
  %v742 = vadd.f32 %v698, %v707
  %v743 = vadd.f32 %v699, %v711
  %v744 = vadd.f32 %v700, %v707
  %v745 = vadd.f32 %v701, %v711
  %v746 = vmax.f32 %v714, 0.0
  %v747 = vmax.f32 %v715, 0.0
  %v748 = vmax.f32 %v716, 0.0
  %v749 = vmax.f32 %v717, 0.0
  %v750 = vmax.f32 %v718, 0.0
  %v751 = vmax.f32 %v719, 0.0
  %v752 = vmax.f32 %v720, 0.0
  %v753 = vmax.f32 %v721, 0.0
  %v754 = vmax.f32 %v722, 0.0
  %v755 = vmax.f32 %v723, 0.0
  %v756 = vmax.f32 %v724, 0.0
  %v757 = vmax.f32 %v725, 0.0
  %v758 = vmax.f32 %v726, 0.0
  %v759 = vmax.f32 %v727, 0.0
  %v760 = vmax.f32 %v728, 0.0
  %v761 = vmax.f32 %v729, 0.0
  %v762 = vmax.f32 %v730, 0.0
  %v763 = vmax.f32 %v731, 0.0
  %v764 = vmax.f32 %v732, 0.0
  %v765 = vmax.f32 %v733, 0.0
  %v766 = vmax.f32 %v734, 0.0
  %v767 = vmax.f32 %v735, 0.0
  %v768 = vmax.f32 %v736, 0.0
  %v769 = vmax.f32 %v737, 0.0
  %v770 = vmax.f32 %v738, 0.0
  %v771 = vmax.f32 %v739, 0.0
  %v772 = vmax.f32 %v740, 0.0
  %v773 = vmax.f32 %v741, 0.0
  %v774 = vmax.f32 %v742, 0.0
  %v775 = vmax.f32 %v743, 0.0
  %v776 = vmax.f32 %v744, 0.0
  %v777 = vmax.f32 %v745, 0.0
  %v778 = vld [vmem:[%s3] sm:$0xff]
  %v779 = vld [vmem:[%s3 + $0x8] sm:$0xff]
  %v780 = vld [vmem:[%s3 + $0x10] sm:$0xff]
  %v781 = vld [vmem:[%s3 + $0x18] sm:$0xff]
  %v782 = vld [vmem:[%s3 + $0x20] sm:$0xff]
  %v783 = vld [vmem:[%s3 + $0x28] sm:$0xff]
  %v784 = vld [vmem:[%s3 + $0x30] sm:$0xff]
  %v785 = vld [vmem:[%s3 + $0x38] sm:$0xff]
  %v786 = vld [vmem:[%s3 + $0x40] sm:$0xff]
  %v787 = vld [vmem:[%s3 + $0x48] sm:$0xff]
  %v788 = vld [vmem:[%s3 + $0x50] sm:$0xff]
  %v789 = vld [vmem:[%s3 + $0x58] sm:$0xff]
  %v790 = vld [vmem:[%s3 + $0x60] sm:$0xff]
  %v791 = vld [vmem:[%s3 + $0x68] sm:$0xff]
  %v792 = vld [vmem:[%s3 + $0x70] sm:$0xff]
  %v793 = vld [vmem:[%s3 + $0x78] sm:$0xff]
  %v794 = vld [vmem:[%s3 + $0x80] sm:$0xff]
  %v795 = vld [vmem:[%s3 + $0x88] sm:$0xff]
  %v796 = vld [vmem:[%s3 + $0x90] sm:$0xff]
  %v797 = vld [vmem:[%s3 + $0x98] sm:$0xff]
  %v798 = vld [vmem:[%s3 + $0xa0] sm:$0xff]
  %v799 = vld [vmem:[%s3 + $0xa8] sm:$0xff]
  %v800 = vld [vmem:[%s3 + $0xb0] sm:$0xff]
  %v801 = vld [vmem:[%s3 + $0xb8] sm:$0xff]
  %v802 = vld [vmem:[%s3 + $0xc0] sm:$0xff]
  %v803 = vld [vmem:[%s3 + $0xc8] sm:$0xff]
  %v804 = vld [vmem:[%s3 + $0xd0] sm:$0xff]
  %v805 = vld [vmem:[%s3 + $0xd8] sm:$0xff]
  %v806 = vld [vmem:[%s3 + $0xe0] sm:$0xff]
  %v807 = vld [vmem:[%s3 + $0xe8] sm:$0xff]
  %v808 = vld [vmem:[%s3 + $0xf0] sm:$0xff]
  %v809 = vld [vmem:[%s3 + $0xf8] sm:$0xff]
  %v810 = vld [vmem:[%s3 + $0x100] sm:$0xff]
  %v811 = vld [vmem:[%s3 + $0x108] sm:$0xff]
  %v812 = vld [vmem:[%s3 + $0x110] sm:$0xff]
  %v813 = vld [vmem:[%s3 + $0x118] sm:$0xff]
  %v814 = vld [vmem:[%s3 + $0x120] sm:$0xff]
  %v815 = vld [vmem:[%s3 + $0x128] sm:$0xff]
  %v816 = vld [vmem:[%s3 + $0x130] sm:$0xff]
  %v817 = vld [vmem:[%s3 + $0x138] sm:$0xff]
  %v818 = vld [vmem:[%s3 + $0x140] sm:$0xff]
  %v819 = vld [vmem:[%s3 + $0x148] sm:$0xff]
  %v820 = vld [vmem:[%s3 + $0x150] sm:$0xff]
  %v821 = vld [vmem:[%s3 + $0x158] sm:$0xff]
  %v822 = vld [vmem:[%s3 + $0x160] sm:$0xff]
  %v823 = vld [vmem:[%s3 + $0x168] sm:$0xff]
  %v824 = vld [vmem:[%s3 + $0x170] sm:$0xff]
  %v825 = vld [vmem:[%s3 + $0x178] sm:$0xff]
  %v826 = vld [vmem:[%s3 + $0x180] sm:$0xff]
  %v827 = vld [vmem:[%s3 + $0x188] sm:$0xff]
  %v828 = vld [vmem:[%s3 + $0x190] sm:$0xff]
  %v829 = vld [vmem:[%s3 + $0x198] sm:$0xff]
  %v830 = vld [vmem:[%s3 + $0x1a0] sm:$0xff]
  %v831 = vld [vmem:[%s3 + $0x1a8] sm:$0xff]
  %v832 = vld [vmem:[%s3 + $0x1b0] sm:$0xff]
  %v833 = vld [vmem:[%s3 + $0x1b8] sm:$0xff]
  %v834 = vld [vmem:[%s3 + $0x1c0] sm:$0x3f]
  %v835 = vld [vmem:[%s3 + $0x1c8] sm:$0x3f]
  %vm868 = vcmask 1046528
  %v869 = vrot.slane %v746, 1
  %v870 = vrot.slane %v748, 1
  %v871 = vsel %vm868, %v869, %v870
  %v872 = vrot.slane %v747, 1
  %v873 = vrot.slane %v749, 1
  %v874 = vsel %vm868, %v872, %v873
  %v875 = vrot.slane %v750, 1
  %v876 = vrot.slane %v752, 1
  %v877 = vsel %vm868, %v875, %v876
  %v878 = vrot.slane %v751, 1
  %v879 = vrot.slane %v753, 1
  %v880 = vsel %vm868, %v878, %v879
  %v881 = vrot.slane %v754, 1
  %v882 = vrot.slane %v756, 1
  %v883 = vsel %vm868, %v881, %v882
  %v884 = vrot.slane %v755, 1
  %v885 = vrot.slane %v757, 1
  %v886 = vsel %vm868, %v884, %v885
  %v887 = vrot.slane %v758, 1
  %v888 = vrot.slane %v760, 1
  %v889 = vsel %vm868, %v887, %v888
  %v890 = vrot.slane %v759, 1
  %v891 = vrot.slane %v761, 1
  %v892 = vsel %vm868, %v890, %v891
  %v893 = vrot.slane %v762, 1
  %v894 = vrot.slane %v764, 1
  %v895 = vsel %vm868, %v893, %v894
  %v896 = vrot.slane %v763, 1
  %v897 = vrot.slane %v765, 1
  %v898 = vsel %vm868, %v896, %v897
  %v899 = vrot.slane %v766, 1
  %v900 = vrot.slane %v768, 1
  %v901 = vsel %vm868, %v899, %v900
  %v902 = vrot.slane %v767, 1
  %v903 = vrot.slane %v769, 1
  %v904 = vsel %vm868, %v902, %v903
  %v905 = vrot.slane %v770, 1
  %v906 = vrot.slane %v772, 1
  %v907 = vsel %vm868, %v905, %v906
  %v908 = vrot.slane %v771, 1
  %v909 = vrot.slane %v773, 1
  %v910 = vsel %vm868, %v908, %v909
  %v911 = vrot.slane %v774, 1
  %v912 = vrot.slane %v776, 1
  %v913 = vsel %vm868, %v911, %v912
  %v914 = vrot.slane %v775, 1
  %v915 = vrot.slane %v777, 1
  %v916 = vsel %vm868, %v914, %v915
  %s925 = scalar_lea.vmem %s3, 464
  %v926 = vld [vmem:[%s925] sm:$0xff]
  %v927 = vld [vmem:[%s925 + $0x8] sm:$0xff]
  %v928 = vld [vmem:[%s925 + $0x10] sm:$0xff]
  %v929 = vld [vmem:[%s925 + $0x18] sm:$0xff]
  %v930 = vld [vmem:[%s925 + $0x20] sm:$0xff]
  %v931 = vld [vmem:[%s925 + $0x28] sm:$0xff]
  %v932 = vld [vmem:[%s925 + $0x30] sm:$0xff]
  %v933 = vld [vmem:[%s925 + $0x38] sm:$0xff]
  %v934 = vld [vmem:[%s925 + $0x40] sm:$0xff]
  %v935 = vld [vmem:[%s925 + $0x48] sm:$0xff]
  %v936 = vld [vmem:[%s925 + $0x50] sm:$0xff]
  %v937 = vld [vmem:[%s925 + $0x58] sm:$0xff]
  %v938 = vld [vmem:[%s925 + $0x60] sm:$0xff]
  %v939 = vld [vmem:[%s925 + $0x68] sm:$0xff]
  %v940 = vld [vmem:[%s925 + $0x70] sm:$0xff]
  %v941 = vld [vmem:[%s925 + $0x78] sm:$0xff]
  %v942 = vld [vmem:[%s925 + $0x80] sm:$0xff]
  %v943 = vld [vmem:[%s925 + $0x88] sm:$0xff]
  %v944 = vld [vmem:[%s925 + $0x90] sm:$0xff]
  %v945 = vld [vmem:[%s925 + $0x98] sm:$0xff]
  %v946 = vld [vmem:[%s925 + $0xa0] sm:$0xff]
  %v947 = vld [vmem:[%s925 + $0xa8] sm:$0xff]
  %v948 = vld [vmem:[%s925 + $0xb0] sm:$0xff]
  %v949 = vld [vmem:[%s925 + $0xb8] sm:$0xff]
  %v950 = vld [vmem:[%s925 + $0xc0] sm:$0xff]
  %v951 = vld [vmem:[%s925 + $0xc8] sm:$0xff]
  %v952 = vld [vmem:[%s925 + $0xd0] sm:$0xff]
  %v953 = vld [vmem:[%s925 + $0xd8] sm:$0xff]
  %v954 = vld [vmem:[%s925 + $0xe0] sm:$0xff]
  %v955 = vld [vmem:[%s925 + $0xe8] sm:$0xff]
  %v956 = vld [vmem:[%s925 + $0xf0] sm:$0xff]
  %v957 = vld [vmem:[%s925 + $0xf8] sm:$0xff]
  %v958 = vld [vmem:[%s925 + $0x100] sm:$0xff]
  %v959 = vld [vmem:[%s925 + $0x108] sm:$0xff]
  %v960 = vld [vmem:[%s925 + $0x110] sm:$0xff]
  %v961 = vld [vmem:[%s925 + $0x118] sm:$0xff]
  %v962 = vld [vmem:[%s925 + $0x120] sm:$0xff]
  %v963 = vld [vmem:[%s925 + $0x128] sm:$0xff]
  %v964 = vld [vmem:[%s925 + $0x130] sm:$0xff]
  %v965 = vld [vmem:[%s925 + $0x138] sm:$0xff]
  %v966 = vld [vmem:[%s925 + $0x140] sm:$0xff]
  %v967 = vld [vmem:[%s925 + $0x148] sm:$0xff]
  %v968 = vld [vmem:[%s925 + $0x150] sm:$0xff]
  %v969 = vld [vmem:[%s925 + $0x158] sm:$0xff]
  %v970 = vld [vmem:[%s925 + $0x160] sm:$0xff]
  %v971 = vld [vmem:[%s925 + $0x168] sm:$0xff]
  %v972 = vld [vmem:[%s925 + $0x170] sm:$0xff]
  %v973 = vld [vmem:[%s925 + $0x178] sm:$0xff]
  %v974 = vld [vmem:[%s925 + $0x180] sm:$0xff]
  %v975 = vld [vmem:[%s925 + $0x188] sm:$0xff]
  %v976 = vld [vmem:[%s925 + $0x190] sm:$0xff]
  %v977 = vld [vmem:[%s925 + $0x198] sm:$0xff]
  %v978 = vld [vmem:[%s925 + $0x1a0] sm:$0xff]
  %v979 = vld [vmem:[%s925 + $0x1a8] sm:$0xff]
  %v980 = vld [vmem:[%s925 + $0x1b0] sm:$0xff]
  %v981 = vld [vmem:[%s925 + $0x1b8] sm:$0xff]
  %v982 = vld [vmem:[%s925 + $0x1c0] sm:$0x3f]
  %v983 = vld [vmem:[%s925 + $0x1c8] sm:$0x3f]
  %vm984 = vcmask 834560
  %v985 = vsel %vm984, %v874, 0
  %v987 = vsel %vm984, %v880, 0
  %v989 = vsel %vm984, %v886, 0
  %v991 = vsel %vm984, %v892, 0
  %v993 = vsel %vm984, %v898, 0
  %v995 = vsel %vm984, %v904, 0
  %v997 = vsel %vm984, %v910, 0
  %v999 = vsel %vm984, %v916, 0
  %vm1001 = vcmask 1045504
  %v1003 = vsel %vm1001, %v982, 0
  %v1006 = vsel %vm1001, %v983, 0
  %1008 = vmatprep.subr.mxu0 %v927
  %1009 = vmatpush1.msra.mxu0 %v926
  %1010 = vmatprep.subr.mxu0 %v929
  %1011 = vmatpush1.msra.mxu0 %v928
  %1012 = vmatprep.subr.mxu0 %v931
  %1013 = vmatpush1.msra.mxu0 %v930
  %1014 = vmatprep.subr.mxu0 %v933
  %1015 = vmatpush1.msra.mxu0 %v932
  %1016 = vmatprep.subr.mxu0 %v935
  %1017 = vmatpush1.msra.mxu0 %v934
  %1018 = vmatprep.subr.mxu0 %v937
  %1019 = vmatpush1.msra.mxu0 %v936
  %1020 = vmatprep.subr.mxu0 %v939
  %1021 = vmatpush1.msra.mxu0 %v938
  %1022 = vmatprep.subr.mxu0 %v941
  %1023 = vmatpush1.msra.mxu0 %v940
  %1024 = vmatprep.subr.mxu0 %v943
  %1025 = vmatpush1.msra.mxu0 %v942
  %1026 = vmatprep.subr.mxu0 %v945
  %1027 = vmatpush1.msra.mxu0 %v944
  %1028 = vmatprep.subr.mxu0 %v947
  %1029 = vmatpush1.msra.mxu0 %v946
  %1030 = vmatprep.subr.mxu0 %v949
  %1031 = vmatpush1.msra.mxu0 %v948
  %1032 = vmatprep.subr.mxu0 %v951
  %1033 = vmatpush1.msra.mxu0 %v950
  %1034 = vmatprep.subr.mxu0 %v953
  %1035 = vmatpush1.msra.mxu0 %v952
  %1036 = vmatprep.subr.mxu0 %v955
  %1037 = vmatpush1.msra.mxu0 %v954
  %1038 = vmatprep.subr.mxu0 %v957
  %1039 = vmatpush1.msra.mxu0 %v956
  %1040 = vmatprep.subr.mxu0 %v959
  %1041 = vmatpush1.msra.mxu0 %v958
  %1042 = vmatprep.subr.mxu0 %v961
  %1043 = vmatpush1.msra.mxu0 %v960
  %1044 = vmatprep.subr.mxu0 %v963
  %1045 = vmatpush1.msra.mxu0 %v962
  %1046 = vmatprep.subr.mxu0 %v965
  %1047 = vmatpush1.msra.mxu0 %v964
  %1048 = vmatprep.subr.mxu0 %v967
  %1049 = vmatpush1.msra.mxu0 %v966
  %1050 = vmatprep.subr.mxu0 %v969
  %1051 = vmatpush1.msra.mxu0 %v968
  %1052 = vmatprep.subr.mxu0 %v971
  %1053 = vmatpush1.msra.mxu0 %v970
  %1054 = vmatprep.subr.mxu0 %v973
  %1055 = vmatpush1.msra.mxu0 %v972
  %1056 = vmatprep.subr.mxu0 %v975
  %1057 = vmatpush1.msra.mxu0 %v974
  %1058 = vmatprep.subr.mxu0 %v977
  %1059 = vmatpush1.msra.mxu0 %v976
  %1060 = vmatprep.subr.mxu0 %v979
  %1061 = vmatpush1.msra.mxu0 %v978
  %1062 = vmatprep.subr.mxu0 %v981
  %1063 = vmatpush1.msra.mxu0 %v980
  %1064 = vmatprep.subr.mxu0 %v1006
  %1065 = vmatpush1.msra.mxu0 %v1003
  %1066 = vmatprep.subr.mxu0 0.0
  %1067 = vmatpush1.msra.mxu0 0.0
  %1068 = vmatprep.subr.mxu0 0.0
  %1069 = vmatpush1.msra.mxu0 0.0
  %1070 = vmatprep.subr.mxu0 0.0
  %1071 = vmatpush1.msra.mxu0 0.0
  %1072 = vmatprep.mubr.f32.mxu0 %v985
  %1073 = vmatmul.mubr.f32.gmra.mrb[0].mxu0 %v871
  %v1074 = vpop.f32.mrb[0].mxu0
  %v1075 = vadd.f32 0.0, %v1074
  %v1076 = vpop.f32.mrb[0].mxu0
  %v1077 = vadd.f32 0.0, %v1076
  %1078 = vmatprep.mubr.f32.mxu0 %v987
  %1079 = vmatmul.mubr.f32.gmra.mrb[0].mxu0 %v877
  %v1080 = vpop.f32.mrb[0].mxu0
  %v1081 = vadd.f32 0.0, %v1080
  %v1082 = vpop.f32.mrb[0].mxu0
  %v1083 = vadd.f32 0.0, %v1082
  %1084 = vmatprep.mubr.f32.mxu0 %v989
  %1085 = vmatmul.mubr.f32.gmra.mrb[0].mxu0 %v883
  %v1086 = vpop.f32.mrb[0].mxu0
  %v1087 = vadd.f32 0.0, %v1086
  %v1088 = vpop.f32.mrb[0].mxu0
  %v1089 = vadd.f32 0.0, %v1088
  %1090 = vmatprep.mubr.f32.mxu0 %v991
  %1091 = vmatmul.mubr.f32.gmra.mrb[0].mxu0 %v889
  %v1092 = vpop.f32.mrb[0].mxu0
  %v1093 = vadd.f32 0.0, %v1092
  %v1094 = vpop.f32.mrb[0].mxu0
  %v1095 = vadd.f32 0.0, %v1094
  %1096 = vmatprep.mubr.f32.mxu0 %v993
  %1097 = vmatmul.mubr.f32.gmra.mrb[0].mxu0 %v895
  %v1098 = vpop.f32.mrb[0].mxu0
  %v1099 = vadd.f32 0.0, %v1098
  %v1100 = vpop.f32.mrb[0].mxu0
  %v1101 = vadd.f32 0.0, %v1100
  %1102 = vmatprep.mubr.f32.mxu0 %v995
  %1103 = vmatmul.mubr.f32.gmra.mrb[0].mxu0 %v901
  %v1104 = vpop.f32.mrb[0].mxu0
  %v1105 = vadd.f32 0.0, %v1104
  %v1106 = vpop.f32.mrb[0].mxu0
  %v1107 = vadd.f32 0.0, %v1106
  %1108 = vmatprep.mubr.f32.mxu0 %v997
  %1109 = vmatmul.mubr.f32.gmra.mrb[0].mxu0 %v907
  %v1110 = vpop.f32.mrb[0].mxu0
  %v1111 = vadd.f32 0.0, %v1110
  %v1112 = vpop.f32.mrb[0].mxu0
  %v1113 = vadd.f32 0.0, %v1112
  %1114 = vmatprep.mubr.f32.mxu0 %v999
  %1115 = vmatmul.mubr.f32.gmra.mrb[0].mxu0 %v913
  %v1116 = vpop.f32.mrb[0].mxu0
  %v1117 = vadd.f32 0.0, %v1116
  %v1118 = vpop.f32.mrb[0].mxu0
  %v1119 = vadd.f32 0.0, %v1118
  %1120 = vdwg.mxu0
  %v1121 = vsel %vm984, %v747, 0
  %v1123 = vsel %vm984, %v751, 0
  %v1125 = vsel %vm984, %v755, 0
  %v1127 = vsel %vm984, %v759, 0
  %v1129 = vsel %vm984, %v763, 0
  %v1131 = vsel %vm984, %v767, 0
  %v1133 = vsel %vm984, %v771, 0
  %v1135 = vsel %vm984, %v775, 0
  %v1138 = vsel %vm1001, %v834, 0
  %v1141 = vsel %vm1001, %v835, 0
  %1143 = vmatprep.subr.mxu0 %v779
  %1144 = vmatpush1.msra.mxu0 %v778
  %1145 = vmatprep.subr.mxu0 %v781
  %1146 = vmatpush1.msra.mxu0 %v780
  %1147 = vmatprep.subr.mxu0 %v783
  %1148 = vmatpush1.msra.mxu0 %v782
  %1149 = vmatprep.subr.mxu0 %v785
  %1150 = vmatpush1.msra.mxu0 %v784
  %1151 = vmatprep.subr.mxu0 %v787
  %1152 = vmatpush1.msra.mxu0 %v786
  %1153 = vmatprep.subr.mxu0 %v789
  %1154 = vmatpush1.msra.mxu0 %v788
  %1155 = vmatprep.subr.mxu0 %v791
  %1156 = vmatpush1.msra.mxu0 %v790
  %1157 = vmatprep.subr.mxu0 %v793
  %1158 = vmatpush1.msra.mxu0 %v792
  %1159 = vmatprep.subr.mxu0 %v795
  %1160 = vmatpush1.msra.mxu0 %v794
  %1161 = vmatprep.subr.mxu0 %v797
  %1162 = vmatpush1.msra.mxu0 %v796
  %1163 = vmatprep.subr.mxu0 %v799
  %1164 = vmatpush1.msra.mxu0 %v798
  %1165 = vmatprep.subr.mxu0 %v801
  %1166 = vmatpush1.msra.mxu0 %v800
  %1167 = vmatprep.subr.mxu0 %v803
  %1168 = vmatpush1.msra.mxu0 %v802
  %1169 = vmatprep.subr.mxu0 %v805
  %1170 = vmatpush1.msra.mxu0 %v804
  %1171 = vmatprep.subr.mxu0 %v807
  %1172 = vmatpush1.msra.mxu0 %v806
  %1173 = vmatprep.subr.mxu0 %v809
  %1174 = vmatpush1.msra.mxu0 %v808
  %1175 = vmatprep.subr.mxu0 %v811
  %1176 = vmatpush1.msra.mxu0 %v810
  %1177 = vmatprep.subr.mxu0 %v813
  %1178 = vmatpush1.msra.mxu0 %v812
  %1179 = vmatprep.subr.mxu0 %v815
  %1180 = vmatpush1.msra.mxu0 %v814
  %1181 = vmatprep.subr.mxu0 %v817
  %1182 = vmatpush1.msra.mxu0 %v816
  %1183 = vmatprep.subr.mxu0 %v819
  %1184 = vmatpush1.msra.mxu0 %v818
  %1185 = vmatprep.subr.mxu0 %v821
  %1186 = vmatpush1.msra.mxu0 %v820
  %1187 = vmatprep.subr.mxu0 %v823
  %1188 = vmatpush1.msra.mxu0 %v822
  %1189 = vmatprep.subr.mxu0 %v825
  %1190 = vmatpush1.msra.mxu0 %v824
  %1191 = vmatprep.subr.mxu0 %v827
  %1192 = vmatpush1.msra.mxu0 %v826
  %1193 = vmatprep.subr.mxu0 %v829
  %1194 = vmatpush1.msra.mxu0 %v828
  %1195 = vmatprep.subr.mxu0 %v831
  %1196 = vmatpush1.msra.mxu0 %v830
  %1197 = vmatprep.subr.mxu0 %v833
  %1198 = vmatpush1.msra.mxu0 %v832
  %1199 = vmatprep.subr.mxu0 %v1141
  %1200 = vmatpush1.msra.mxu0 %v1138
  %1201 = vmatprep.subr.mxu0 0.0
  %1202 = vmatpush1.msra.mxu0 0.0
  %1203 = vmatprep.subr.mxu0 0.0
  %1204 = vmatpush1.msra.mxu0 0.0
  %1205 = vmatprep.subr.mxu0 0.0
  %1206 = vmatpush1.msra.mxu0 0.0
  %1207 = vmatprep.mubr.f32.mxu0 %v1121
  %1208 = vmatmul.mubr.f32.gmra.mrb[0].mxu0 %v746
  %v1209 = vpop.f32.mrb[0].mxu0
  %v1210 = vadd.f32 %v1075, %v1209
  %v1211 = vpop.f32.mrb[0].mxu0
  %v1212 = vadd.f32 %v1077, %v1211
  %1213 = vmatprep.mubr.f32.mxu0 %v1123
  %1214 = vmatmul.mubr.f32.gmra.mrb[0].mxu0 %v750
  %v1215 = vpop.f32.mrb[0].mxu0
  %v1216 = vadd.f32 %v1081, %v1215
  %v1217 = vpop.f32.mrb[0].mxu0
  %v1218 = vadd.f32 %v1083, %v1217
  %1219 = vmatprep.mubr.f32.mxu0 %v1125
  %1220 = vmatmul.mubr.f32.gmra.mrb[0].mxu0 %v754
  %v1221 = vpop.f32.mrb[0].mxu0
  %v1222 = vadd.f32 %v1087, %v1221
  %v1223 = vpop.f32.mrb[0].mxu0
  %v1224 = vadd.f32 %v1089, %v1223
  %1225 = vmatprep.mubr.f32.mxu0 %v1127
  %1226 = vmatmul.mubr.f32.gmra.mrb[0].mxu0 %v758
  %v1227 = vpop.f32.mrb[0].mxu0
  %v1228 = vadd.f32 %v1093, %v1227
  %v1229 = vpop.f32.mrb[0].mxu0
  %v1230 = vadd.f32 %v1095, %v1229
  %1231 = vmatprep.mubr.f32.mxu0 %v1129
  %1232 = vmatmul.mubr.f32.gmra.mrb[0].mxu0 %v762
  %v1233 = vpop.f32.mrb[0].mxu0
  %v1234 = vadd.f32 %v1099, %v1233
  %v1235 = vpop.f32.mrb[0].mxu0
  %v1236 = vadd.f32 %v1101, %v1235
  %1237 = vmatprep.mubr.f32.mxu0 %v1131
  %1238 = vmatmul.mubr.f32.gmra.mrb[0].mxu0 %v766
  %v1239 = vpop.f32.mrb[0].mxu0
  %v1240 = vadd.f32 %v1105, %v1239
  %v1241 = vpop.f32.mrb[0].mxu0
  %v1242 = vadd.f32 %v1107, %v1241
  %1243 = vmatprep.mubr.f32.mxu0 %v1133
  %1244 = vmatmul.mubr.f32.gmra.mrb[0].mxu0 %v770
  %v1245 = vpop.f32.mrb[0].mxu0
  %v1246 = vadd.f32 %v1111, %v1245
  %v1247 = vpop.f32.mrb[0].mxu0
  %v1248 = vadd.f32 %v1113, %v1247
  %1249 = vmatprep.mubr.f32.mxu0 %v1135
  %1250 = vmatmul.mubr.f32.gmra.mrb[0].mxu0 %v774
  %v1251 = vpop.f32.mrb[0].mxu0
  %v1252 = vadd.f32 %v1117, %v1251
  %v1253 = vpop.f32.mrb[0].mxu0
  %v1254 = vadd.f32 %v1119, %v1253
  %1255 = vdwg.mxu0
  %v1256 = vrot.slane %v746, 2
  %v1257 = vrot.slane %v748, 2
  %v1258 = vsel %vm1001, %v1256, %v1257
  %v1259 = vrot.slane %v747, 2
  %v1260 = vrot.slane %v749, 2
  %v1261 = vsel %vm1001, %v1259, %v1260
  %v1262 = vrot.slane %v750, 2
  %v1263 = vrot.slane %v752, 2
  %v1264 = vsel %vm1001, %v1262, %v1263
  %v1265 = vrot.slane %v751, 2
  %v1266 = vrot.slane %v753, 2
  %v1267 = vsel %vm1001, %v1265, %v1266
  %v1268 = vrot.slane %v754, 2
  %v1269 = vrot.slane %v756, 2
  %v1270 = vsel %vm1001, %v1268, %v1269
  %v1271 = vrot.slane %v755, 2
  %v1272 = vrot.slane %v757, 2
  %v1273 = vsel %vm1001, %v1271, %v1272
  %v1274 = vrot.slane %v758, 2
  %v1275 = vrot.slane %v760, 2
  %v1276 = vsel %vm1001, %v1274, %v1275
  %v1277 = vrot.slane %v759, 2
  %v1278 = vrot.slane %v761, 2
  %v1279 = vsel %vm1001, %v1277, %v1278
  %v1280 = vrot.slane %v762, 2
  %v1281 = vrot.slane %v764, 2
  %v1282 = vsel %vm1001, %v1280, %v1281
  %v1283 = vrot.slane %v763, 2
  %v1284 = vrot.slane %v765, 2
  %v1285 = vsel %vm1001, %v1283, %v1284
  %v1286 = vrot.slane %v766, 2
  %v1287 = vrot.slane %v768, 2
  %v1288 = vsel %vm1001, %v1286, %v1287
  %v1289 = vrot.slane %v767, 2
  %v1290 = vrot.slane %v769, 2
  %v1291 = vsel %vm1001, %v1289, %v1290
  %v1292 = vrot.slane %v770, 2
  %v1293 = vrot.slane %v772, 2
  %v1294 = vsel %vm1001, %v1292, %v1293
  %v1295 = vrot.slane %v771, 2
  %v1296 = vrot.slane %v773, 2
  %v1297 = vsel %vm1001, %v1295, %v1296
  %v1298 = vrot.slane %v774, 2
  %v1299 = vrot.slane %v776, 2
  %v1300 = vsel %vm1001, %v1298, %v1299
  %v1301 = vrot.slane %v775, 2
  %v1302 = vrot.slane %v777, 2
  %v1303 = vsel %vm1001, %v1301, %v1302
  %s1312 = scalar_lea.vmem %s3, 928
  %v1313 = vld [vmem:[%s1312] sm:$0xff]
  %v1314 = vld [vmem:[%s1312 + $0x8] sm:$0xff]
  %v1315 = vld [vmem:[%s1312 + $0x10] sm:$0xff]
  %v1316 = vld [vmem:[%s1312 + $0x18] sm:$0xff]
  %v1317 = vld [vmem:[%s1312 + $0x20] sm:$0xff]
  %v1318 = vld [vmem:[%s1312 + $0x28] sm:$0xff]
  %v1319 = vld [vmem:[%s1312 + $0x30] sm:$0xff]
  %v1320 = vld [vmem:[%s1312 + $0x38] sm:$0xff]
  %v1321 = vld [vmem:[%s1312 + $0x40] sm:$0xff]
  %v1322 = vld [vmem:[%s1312 + $0x48] sm:$0xff]
  %v1323 = vld [vmem:[%s1312 + $0x50] sm:$0xff]
  %v1324 = vld [vmem:[%s1312 + $0x58] sm:$0xff]
  %v1325 = vld [vmem:[%s1312 + $0x60] sm:$0xff]
  %v1326 = vld [vmem:[%s1312 + $0x68] sm:$0xff]
  %v1327 = vld [vmem:[%s1312 + $0x70] sm:$0xff]
  %v1328 = vld [vmem:[%s1312 + $0x78] sm:$0xff]
  %v1329 = vld [vmem:[%s1312 + $0x80] sm:$0xff]
  %v1330 = vld [vmem:[%s1312 + $0x88] sm:$0xff]
  %v1331 = vld [vmem:[%s1312 + $0x90] sm:$0xff]
  %v1332 = vld [vmem:[%s1312 + $0x98] sm:$0xff]
  %v1333 = vld [vmem:[%s1312 + $0xa0] sm:$0xff]
  %v1334 = vld [vmem:[%s1312 + $0xa8] sm:$0xff]
  %v1335 = vld [vmem:[%s1312 + $0xb0] sm:$0xff]
  %v1336 = vld [vmem:[%s1312 + $0xb8] sm:$0xff]
  %v1337 = vld [vmem:[%s1312 + $0xc0] sm:$0xff]
  %v1338 = vld [vmem:[%s1312 + $0xc8] sm:$0xff]
  %v1339 = vld [vmem:[%s1312 + $0xd0] sm:$0xff]
  %v1340 = vld [vmem:[%s1312 + $0xd8] sm:$0xff]
  %v1341 = vld [vmem:[%s1312 + $0xe0] sm:$0xff]
  %v1342 = vld [vmem:[%s1312 + $0xe8] sm:$0xff]
  %v1343 = vld [vmem:[%s1312 + $0xf0] sm:$0xff]
  %v1344 = vld [vmem:[%s1312 + $0xf8] sm:$0xff]
  %v1345 = vld [vmem:[%s1312 + $0x100] sm:$0xff]
  %v1346 = vld [vmem:[%s1312 + $0x108] sm:$0xff]
  %v1347 = vld [vmem:[%s1312 + $0x110] sm:$0xff]
  %v1348 = vld [vmem:[%s1312 + $0x118] sm:$0xff]
  %v1349 = vld [vmem:[%s1312 + $0x120] sm:$0xff]
  %v1350 = vld [vmem:[%s1312 + $0x128] sm:$0xff]
  %v1351 = vld [vmem:[%s1312 + $0x130] sm:$0xff]
  %v1352 = vld [vmem:[%s1312 + $0x138] sm:$0xff]
  %v1353 = vld [vmem:[%s1312 + $0x140] sm:$0xff]
  %v1354 = vld [vmem:[%s1312 + $0x148] sm:$0xff]
  %v1355 = vld [vmem:[%s1312 + $0x150] sm:$0xff]
  %v1356 = vld [vmem:[%s1312 + $0x158] sm:$0xff]
  %v1357 = vld [vmem:[%s1312 + $0x160] sm:$0xff]
  %v1358 = vld [vmem:[%s1312 + $0x168] sm:$0xff]
  %v1359 = vld [vmem:[%s1312 + $0x170] sm:$0xff]
  %v1360 = vld [vmem:[%s1312 + $0x178] sm:$0xff]
  %v1361 = vld [vmem:[%s1312 + $0x180] sm:$0xff]
  %v1362 = vld [vmem:[%s1312 + $0x188] sm:$0xff]
  %v1363 = vld [vmem:[%s1312 + $0x190] sm:$0xff]
  %v1364 = vld [vmem:[%s1312 + $0x198] sm:$0xff]
  %v1365 = vld [vmem:[%s1312 + $0x1a0] sm:$0xff]
  %v1366 = vld [vmem:[%s1312 + $0x1a8] sm:$0xff]
  %v1367 = vld [vmem:[%s1312 + $0x1b0] sm:$0xff]
  %v1368 = vld [vmem:[%s1312 + $0x1b8] sm:$0xff]
  %v1369 = vld [vmem:[%s1312 + $0x1c0] sm:$0x3f]
  %v1370 = vld [vmem:[%s1312 + $0x1c8] sm:$0x3f]
  %v1371 = vsel %vm984, %v1261, 0
  %v1373 = vsel %vm984, %v1267, 0
  %v1375 = vsel %vm984, %v1273, 0
  %v1377 = vsel %vm984, %v1279, 0
  %v1379 = vsel %vm984, %v1285, 0
  %v1381 = vsel %vm984, %v1291, 0
  %v1383 = vsel %vm984, %v1297, 0
  %v1385 = vsel %vm984, %v1303, 0
  %v1388 = vsel %vm1001, %v1369, 0
  %v1391 = vsel %vm1001, %v1370, 0
  %1393 = vmatprep.subr.mxu0 %v1314
  %1394 = vmatpush1.msra.mxu0 %v1313
  %1395 = vmatprep.subr.mxu0 %v1316
  %1396 = vmatpush1.msra.mxu0 %v1315
  %1397 = vmatprep.subr.mxu0 %v1318
  %1398 = vmatpush1.msra.mxu0 %v1317
  %1399 = vmatprep.subr.mxu0 %v1320
  %1400 = vmatpush1.msra.mxu0 %v1319
  %1401 = vmatprep.subr.mxu0 %v1322
  %1402 = vmatpush1.msra.mxu0 %v1321
  %1403 = vmatprep.subr.mxu0 %v1324
  %1404 = vmatpush1.msra.mxu0 %v1323
  %1405 = vmatprep.subr.mxu0 %v1326
  %1406 = vmatpush1.msra.mxu0 %v1325
  %1407 = vmatprep.subr.mxu0 %v1328
  %1408 = vmatpush1.msra.mxu0 %v1327
  %1409 = vmatprep.subr.mxu0 %v1330
  %1410 = vmatpush1.msra.mxu0 %v1329
  %1411 = vmatprep.subr.mxu0 %v1332
  %1412 = vmatpush1.msra.mxu0 %v1331
  %1413 = vmatprep.subr.mxu0 %v1334
  %1414 = vmatpush1.msra.mxu0 %v1333
  %1415 = vmatprep.subr.mxu0 %v1336
  %1416 = vmatpush1.msra.mxu0 %v1335
  %1417 = vmatprep.subr.mxu0 %v1338
  %1418 = vmatpush1.msra.mxu0 %v1337
  %1419 = vmatprep.subr.mxu0 %v1340
  %1420 = vmatpush1.msra.mxu0 %v1339
  %1421 = vmatprep.subr.mxu0 %v1342
  %1422 = vmatpush1.msra.mxu0 %v1341
  %1423 = vmatprep.subr.mxu0 %v1344
  %1424 = vmatpush1.msra.mxu0 %v1343
  %1425 = vmatprep.subr.mxu0 %v1346
  %1426 = vmatpush1.msra.mxu0 %v1345
  %1427 = vmatprep.subr.mxu0 %v1348
  %1428 = vmatpush1.msra.mxu0 %v1347
  %1429 = vmatprep.subr.mxu0 %v1350
  %1430 = vmatpush1.msra.mxu0 %v1349
  %1431 = vmatprep.subr.mxu0 %v1352
  %1432 = vmatpush1.msra.mxu0 %v1351
  %1433 = vmatprep.subr.mxu0 %v1354
  %1434 = vmatpush1.msra.mxu0 %v1353
  %1435 = vmatprep.subr.mxu0 %v1356
  %1436 = vmatpush1.msra.mxu0 %v1355
  %1437 = vmatprep.subr.mxu0 %v1358
  %1438 = vmatpush1.msra.mxu0 %v1357
  %1439 = vmatprep.subr.mxu0 %v1360
  %1440 = vmatpush1.msra.mxu0 %v1359
  %1441 = vmatprep.subr.mxu0 %v1362
  %1442 = vmatpush1.msra.mxu0 %v1361
  %1443 = vmatprep.subr.mxu0 %v1364
  %1444 = vmatpush1.msra.mxu0 %v1363
  %1445 = vmatprep.subr.mxu0 %v1366
  %1446 = vmatpush1.msra.mxu0 %v1365
  %1447 = vmatprep.subr.mxu0 %v1368
  %1448 = vmatpush1.msra.mxu0 %v1367
  %1449 = vmatprep.subr.mxu0 %v1391
  %1450 = vmatpush1.msra.mxu0 %v1388
  %1451 = vmatprep.subr.mxu0 0.0
  %1452 = vmatpush1.msra.mxu0 0.0
  %1453 = vmatprep.subr.mxu0 0.0
  %1454 = vmatpush1.msra.mxu0 0.0
  %1455 = vmatprep.subr.mxu0 0.0
  %1456 = vmatpush1.msra.mxu0 0.0
  %1457 = vmatprep.mubr.f32.mxu0 %v1371
  %1458 = vmatmul.mubr.f32.gmra.mrb[0].mxu0 %v1258
  %v1459 = vpop.f32.mrb[0].mxu0
  %v1460 = vadd.f32 0.0, %v1459
  %v1461 = vpop.f32.mrb[0].mxu0
  %v1462 = vadd.f32 0.0, %v1461
  %1463 = vmatprep.mubr.f32.mxu0 %v1373
  %1464 = vmatmul.mubr.f32.gmra.mrb[0].mxu0 %v1264
  %v1465 = vpop.f32.mrb[0].mxu0
  %v1466 = vadd.f32 0.0, %v1465
  %v1467 = vpop.f32.mrb[0].mxu0
  %v1468 = vadd.f32 0.0, %v1467
  %1469 = vmatprep.mubr.f32.mxu0 %v1375
  %1470 = vmatmul.mubr.f32.gmra.mrb[0].mxu0 %v1270
  %v1471 = vpop.f32.mrb[0].mxu0
  %v1472 = vadd.f32 0.0, %v1471
  %v1473 = vpop.f32.mrb[0].mxu0
  %v1474 = vadd.f32 0.0, %v1473
  %1475 = vmatprep.mubr.f32.mxu0 %v1377
  %1476 = vmatmul.mubr.f32.gmra.mrb[0].mxu0 %v1276
  %v1477 = vpop.f32.mrb[0].mxu0
  %v1478 = vadd.f32 0.0, %v1477
  %v1479 = vpop.f32.mrb[0].mxu0
  %v1480 = vadd.f32 0.0, %v1479
  %1481 = vmatprep.mubr.f32.mxu0 %v1379
  %1482 = vmatmul.mubr.f32.gmra.mrb[0].mxu0 %v1282
  %v1483 = vpop.f32.mrb[0].mxu0
  %v1484 = vadd.f32 0.0, %v1483
  %v1485 = vpop.f32.mrb[0].mxu0
  %v1486 = vadd.f32 0.0, %v1485
  %1487 = vmatprep.mubr.f32.mxu0 %v1381
  %1488 = vmatmul.mubr.f32.gmra.mrb[0].mxu0 %v1288
  %v1489 = vpop.f32.mrb[0].mxu0
  %v1490 = vadd.f32 0.0, %v1489
  %v1491 = vpop.f32.mrb[0].mxu0
  %v1492 = vadd.f32 0.0, %v1491
  %1493 = vmatprep.mubr.f32.mxu0 %v1383
  %1494 = vmatmul.mubr.f32.gmra.mrb[0].mxu0 %v1294
  %v1495 = vpop.f32.mrb[0].mxu0
  %v1496 = vadd.f32 0.0, %v1495
  %v1497 = vpop.f32.mrb[0].mxu0
  %v1498 = vadd.f32 0.0, %v1497
  %1499 = vmatprep.mubr.f32.mxu0 %v1385
  %1500 = vmatmul.mubr.f32.gmra.mrb[0].mxu0 %v1300
  %v1501 = vpop.f32.mrb[0].mxu0
  %v1502 = vadd.f32 0.0, %v1501
  %v1503 = vpop.f32.mrb[0].mxu0
  %v1504 = vadd.f32 0.0, %v1503
  %1505 = vdwg.mxu0
  %v1506 = vadd.f32 %v1210, %v1460
  %v1507 = vadd.f32 %v1212, %v1462
  %v1508 = vadd.f32 %v1216, %v1466
  %v1509 = vadd.f32 %v1218, %v1468
  %v1510 = vadd.f32 %v1222, %v1472
  %v1511 = vadd.f32 %v1224, %v1474
  %v1512 = vadd.f32 %v1228, %v1478
  %v1513 = vadd.f32 %v1230, %v1480
  %v1514 = vadd.f32 %v1234, %v1484
  %v1515 = vadd.f32 %v1236, %v1486
  %v1516 = vadd.f32 %v1240, %v1490
  %v1517 = vadd.f32 %v1242, %v1492
  %v1518 = vadd.f32 %v1246, %v1496
  %v1519 = vadd.f32 %v1248, %v1498
  %v1520 = vadd.f32 %v1252, %v1502
  %v1521 = vadd.f32 %v1254, %v1504
  %vm1522 = vcmask 1044480
  %v1523 = vrot.slane %v746, 3
  %v1524 = vrot.slane %v748, 3
  %v1525 = vsel %vm1522, %v1523, %v1524
  %v1526 = vrot.slane %v747, 3
  %v1527 = vrot.slane %v749, 3
  %v1528 = vsel %vm1522, %v1526, %v1527
  %v1529 = vrot.slane %v750, 3
  %v1530 = vrot.slane %v752, 3
  %v1531 = vsel %vm1522, %v1529, %v1530
  %v1532 = vrot.slane %v751, 3
  %v1533 = vrot.slane %v753, 3
  %v1534 = vsel %vm1522, %v1532, %v1533
  %v1535 = vrot.slane %v754, 3
  %v1536 = vrot.slane %v756, 3
  %v1537 = vsel %vm1522, %v1535, %v1536
  %v1538 = vrot.slane %v755, 3
  %v1539 = vrot.slane %v757, 3
  %v1540 = vsel %vm1522, %v1538, %v1539
  %v1541 = vrot.slane %v758, 3
  %v1542 = vrot.slane %v760, 3
  %v1543 = vsel %vm1522, %v1541, %v1542
  %v1544 = vrot.slane %v759, 3
  %v1545 = vrot.slane %v761, 3
  %v1546 = vsel %vm1522, %v1544, %v1545
  %v1547 = vrot.slane %v762, 3
  %v1548 = vrot.slane %v764, 3
  %v1549 = vsel %vm1522, %v1547, %v1548
  %v1550 = vrot.slane %v763, 3
  %v1551 = vrot.slane %v765, 3
  %v1552 = vsel %vm1522, %v1550, %v1551
  %v1553 = vrot.slane %v766, 3
  %v1554 = vrot.slane %v768, 3
  %v1555 = vsel %vm1522, %v1553, %v1554
  %v1556 = vrot.slane %v767, 3
  %v1557 = vrot.slane %v769, 3
  %v1558 = vsel %vm1522, %v1556, %v1557
  %v1559 = vrot.slane %v770, 3
  %v1560 = vrot.slane %v772, 3
  %v1561 = vsel %vm1522, %v1559, %v1560
  %v1562 = vrot.slane %v771, 3
  %v1563 = vrot.slane %v773, 3
  %v1564 = vsel %vm1522, %v1562, %v1563
  %v1565 = vrot.slane %v774, 3
  %v1566 = vrot.slane %v776, 3
  %v1567 = vsel %vm1522, %v1565, %v1566
  %v1568 = vrot.slane %v775, 3
  %v1569 = vrot.slane %v777, 3
  %v1570 = vsel %vm1522, %v1568, %v1569
  %s1579 = scalar_lea.vmem %s3, 1392
  %v1580 = vld [vmem:[%s1579] sm:$0xff]
  %v1581 = vld [vmem:[%s1579 + $0x8] sm:$0xff]
  %v1582 = vld [vmem:[%s1579 + $0x10] sm:$0xff]
  %v1583 = vld [vmem:[%s1579 + $0x18] sm:$0xff]
  %v1584 = vld [vmem:[%s1579 + $0x20] sm:$0xff]
  %v1585 = vld [vmem:[%s1579 + $0x28] sm:$0xff]
  %v1586 = vld [vmem:[%s1579 + $0x30] sm:$0xff]
  %v1587 = vld [vmem:[%s1579 + $0x38] sm:$0xff]
  %v1588 = vld [vmem:[%s1579 + $0x40] sm:$0xff]
  %v1589 = vld [vmem:[%s1579 + $0x48] sm:$0xff]
  %v1590 = vld [vmem:[%s1579 + $0x50] sm:$0xff]
  %v1591 = vld [vmem:[%s1579 + $0x58] sm:$0xff]
  %v1592 = vld [vmem:[%s1579 + $0x60] sm:$0xff]
  %v1593 = vld [vmem:[%s1579 + $0x68] sm:$0xff]
  %v1594 = vld [vmem:[%s1579 + $0x70] sm:$0xff]
  %v1595 = vld [vmem:[%s1579 + $0x78] sm:$0xff]
  %v1596 = vld [vmem:[%s1579 + $0x80] sm:$0xff]
  %v1597 = vld [vmem:[%s1579 + $0x88] sm:$0xff]
  %v1598 = vld [vmem:[%s1579 + $0x90] sm:$0xff]
  %v1599 = vld [vmem:[%s1579 + $0x98] sm:$0xff]
  %v1600 = vld [vmem:[%s1579 + $0xa0] sm:$0xff]
  %v1601 = vld [vmem:[%s1579 + $0xa8] sm:$0xff]
  %v1602 = vld [vmem:[%s1579 + $0xb0] sm:$0xff]
  %v1603 = vld [vmem:[%s1579 + $0xb8] sm:$0xff]
  %v1604 = vld [vmem:[%s1579 + $0xc0] sm:$0xff]
  %v1605 = vld [vmem:[%s1579 + $0xc8] sm:$0xff]
  %v1606 = vld [vmem:[%s1579 + $0xd0] sm:$0xff]
  %v1607 = vld [vmem:[%s1579 + $0xd8] sm:$0xff]
  %v1608 = vld [vmem:[%s1579 + $0xe0] sm:$0xff]
  %v1609 = vld [vmem:[%s1579 + $0xe8] sm:$0xff]
  %v1610 = vld [vmem:[%s1579 + $0xf0] sm:$0xff]
  %v1611 = vld [vmem:[%s1579 + $0xf8] sm:$0xff]
  %v1612 = vld [vmem:[%s1579 + $0x100] sm:$0xff]
  %v1613 = vld [vmem:[%s1579 + $0x108] sm:$0xff]
  %v1614 = vld [vmem:[%s1579 + $0x110] sm:$0xff]
  %v1615 = vld [vmem:[%s1579 + $0x118] sm:$0xff]
  %v1616 = vld [vmem:[%s1579 + $0x120] sm:$0xff]
  %v1617 = vld [vmem:[%s1579 + $0x128] sm:$0xff]
  %v1618 = vld [vmem:[%s1579 + $0x130] sm:$0xff]
  %v1619 = vld [vmem:[%s1579 + $0x138] sm:$0xff]
  %v1620 = vld [vmem:[%s1579 + $0x140] sm:$0xff]
  %v1621 = vld [vmem:[%s1579 + $0x148] sm:$0xff]
  %v1622 = vld [vmem:[%s1579 + $0x150] sm:$0xff]
  %v1623 = vld [vmem:[%s1579 + $0x158] sm:$0xff]
  %v1624 = vld [vmem:[%s1579 + $0x160] sm:$0xff]
  %v1625 = vld [vmem:[%s1579 + $0x168] sm:$0xff]
  %v1626 = vld [vmem:[%s1579 + $0x170] sm:$0xff]
  %v1627 = vld [vmem:[%s1579 + $0x178] sm:$0xff]
  %v1628 = vld [vmem:[%s1579 + $0x180] sm:$0xff]
  %v1629 = vld [vmem:[%s1579 + $0x188] sm:$0xff]
  %v1630 = vld [vmem:[%s1579 + $0x190] sm:$0xff]
  %v1631 = vld [vmem:[%s1579 + $0x198] sm:$0xff]
  %v1632 = vld [vmem:[%s1579 + $0x1a0] sm:$0xff]
  %v1633 = vld [vmem:[%s1579 + $0x1a8] sm:$0xff]
  %v1634 = vld [vmem:[%s1579 + $0x1b0] sm:$0xff]
  %v1635 = vld [vmem:[%s1579 + $0x1b8] sm:$0xff]
  %v1636 = vld [vmem:[%s1579 + $0x1c0] sm:$0x3f]
  %v1637 = vld [vmem:[%s1579 + $0x1c8] sm:$0x3f]
  %v1638 = vsel %vm984, %v1528, 0
  %v1640 = vsel %vm984, %v1534, 0
  %v1642 = vsel %vm984, %v1540, 0
  %v1644 = vsel %vm984, %v1546, 0
  %v1646 = vsel %vm984, %v1552, 0
  %v1648 = vsel %vm984, %v1558, 0
  %v1650 = vsel %vm984, %v1564, 0
  %v1652 = vsel %vm984, %v1570, 0
  %v1655 = vsel %vm1001, %v1636, 0
  %v1658 = vsel %vm1001, %v1637, 0
  %1660 = vmatprep.subr.mxu0 %v1581
  %1661 = vmatpush1.msra.mxu0 %v1580
  %1662 = vmatprep.subr.mxu0 %v1583
  %1663 = vmatpush1.msra.mxu0 %v1582
  %1664 = vmatprep.subr.mxu0 %v1585
  %1665 = vmatpush1.msra.mxu0 %v1584
  %1666 = vmatprep.subr.mxu0 %v1587
  %1667 = vmatpush1.msra.mxu0 %v1586
  %1668 = vmatprep.subr.mxu0 %v1589
  %1669 = vmatpush1.msra.mxu0 %v1588
  %1670 = vmatprep.subr.mxu0 %v1591
  %1671 = vmatpush1.msra.mxu0 %v1590
  %1672 = vmatprep.subr.mxu0 %v1593
  %1673 = vmatpush1.msra.mxu0 %v1592
  %1674 = vmatprep.subr.mxu0 %v1595
  %1675 = vmatpush1.msra.mxu0 %v1594
  %1676 = vmatprep.subr.mxu0 %v1597
  %1677 = vmatpush1.msra.mxu0 %v1596
  %1678 = vmatprep.subr.mxu0 %v1599
  %1679 = vmatpush1.msra.mxu0 %v1598
  %1680 = vmatprep.subr.mxu0 %v1601
  %1681 = vmatpush1.msra.mxu0 %v1600
  %1682 = vmatprep.subr.mxu0 %v1603
  %1683 = vmatpush1.msra.mxu0 %v1602
  %1684 = vmatprep.subr.mxu0 %v1605
  %1685 = vmatpush1.msra.mxu0 %v1604
  %1686 = vmatprep.subr.mxu0 %v1607
  %1687 = vmatpush1.msra.mxu0 %v1606
  %1688 = vmatprep.subr.mxu0 %v1609
  %1689 = vmatpush1.msra.mxu0 %v1608
  %1690 = vmatprep.subr.mxu0 %v1611
  %1691 = vmatpush1.msra.mxu0 %v1610
  %1692 = vmatprep.subr.mxu0 %v1613
  %1693 = vmatpush1.msra.mxu0 %v1612
  %1694 = vmatprep.subr.mxu0 %v1615
  %1695 = vmatpush1.msra.mxu0 %v1614
  %1696 = vmatprep.subr.mxu0 %v1617
  %1697 = vmatpush1.msra.mxu0 %v1616
  %1698 = vmatprep.subr.mxu0 %v1619
  %1699 = vmatpush1.msra.mxu0 %v1618
  %1700 = vmatprep.subr.mxu0 %v1621
  %1701 = vmatpush1.msra.mxu0 %v1620
  %1702 = vmatprep.subr.mxu0 %v1623
  %1703 = vmatpush1.msra.mxu0 %v1622
  %1704 = vmatprep.subr.mxu0 %v1625
  %1705 = vmatpush1.msra.mxu0 %v1624
  %1706 = vmatprep.subr.mxu0 %v1627
  %1707 = vmatpush1.msra.mxu0 %v1626
  %1708 = vmatprep.subr.mxu0 %v1629
  %1709 = vmatpush1.msra.mxu0 %v1628
  %1710 = vmatprep.subr.mxu0 %v1631
  %1711 = vmatpush1.msra.mxu0 %v1630
  %1712 = vmatprep.subr.mxu0 %v1633
  %1713 = vmatpush1.msra.mxu0 %v1632
  %1714 = vmatprep.subr.mxu0 %v1635
  %1715 = vmatpush1.msra.mxu0 %v1634
  %1716 = vmatprep.subr.mxu0 %v1658
  %1717 = vmatpush1.msra.mxu0 %v1655
  %1718 = vmatprep.subr.mxu0 0.0
  %1719 = vmatpush1.msra.mxu0 0.0
  %1720 = vmatprep.subr.mxu0 0.0
  %1721 = vmatpush1.msra.mxu0 0.0
  %1722 = vmatprep.subr.mxu0 0.0
  %1723 = vmatpush1.msra.mxu0 0.0
  %1724 = vmatprep.mubr.f32.mxu0 %v1638
  %1725 = vmatmul.mubr.f32.gmra.mrb[0].mxu0 %v1525
  %v1726 = vpop.f32.mrb[0].mxu0
  %v1727 = vadd.f32 0.0, %v1726
  %v1728 = vpop.f32.mrb[0].mxu0
  %v1729 = vadd.f32 0.0, %v1728
  %1730 = vmatprep.mubr.f32.mxu0 %v1640
  %1731 = vmatmul.mubr.f32.gmra.mrb[0].mxu0 %v1531
  %v1732 = vpop.f32.mrb[0].mxu0
  %v1733 = vadd.f32 0.0, %v1732
  %v1734 = vpop.f32.mrb[0].mxu0
  %v1735 = vadd.f32 0.0, %v1734
  %1736 = vmatprep.mubr.f32.mxu0 %v1642
  %1737 = vmatmul.mubr.f32.gmra.mrb[0].mxu0 %v1537
  %v1738 = vpop.f32.mrb[0].mxu0
  %v1739 = vadd.f32 0.0, %v1738
  %v1740 = vpop.f32.mrb[0].mxu0
  %v1741 = vadd.f32 0.0, %v1740
  %1742 = vmatprep.mubr.f32.mxu0 %v1644
  %1743 = vmatmul.mubr.f32.gmra.mrb[0].mxu0 %v1543
  %v1744 = vpop.f32.mrb[0].mxu0
  %v1745 = vadd.f32 0.0, %v1744
  %v1746 = vpop.f32.mrb[0].mxu0
  %v1747 = vadd.f32 0.0, %v1746
  %1748 = vmatprep.mubr.f32.mxu0 %v1646
  %1749 = vmatmul.mubr.f32.gmra.mrb[0].mxu0 %v1549
  %v1750 = vpop.f32.mrb[0].mxu0
  %v1751 = vadd.f32 0.0, %v1750
  %v1752 = vpop.f32.mrb[0].mxu0
  %v1753 = vadd.f32 0.0, %v1752
  %1754 = vmatprep.mubr.f32.mxu0 %v1648
  %1755 = vmatmul.mubr.f32.gmra.mrb[0].mxu0 %v1555
  %v1756 = vpop.f32.mrb[0].mxu0
  %v1757 = vadd.f32 0.0, %v1756
  %v1758 = vpop.f32.mrb[0].mxu0
  %v1759 = vadd.f32 0.0, %v1758
  %1760 = vmatprep.mubr.f32.mxu0 %v1650
  %1761 = vmatmul.mubr.f32.gmra.mrb[0].mxu0 %v1561
  %v1762 = vpop.f32.mrb[0].mxu0
  %v1763 = vadd.f32 0.0, %v1762
  %v1764 = vpop.f32.mrb[0].mxu0
  %v1765 = vadd.f32 0.0, %v1764
  %1766 = vmatprep.mubr.f32.mxu0 %v1652
  %1767 = vmatmul.mubr.f32.gmra.mrb[0].mxu0 %v1567
  %v1768 = vpop.f32.mrb[0].mxu0
  %v1769 = vadd.f32 0.0, %v1768
  %v1770 = vpop.f32.mrb[0].mxu0
  %v1771 = vadd.f32 0.0, %v1770
  %1772 = vdwg.mxu0
  %v1773 = vadd.f32 %v1506, %v1727
  %v1774 = vadd.f32 %v1507, %v1729
  %v1775 = vadd.f32 %v1508, %v1733
  %v1776 = vadd.f32 %v1509, %v1735
  %v1777 = vadd.f32 %v1510, %v1739
  %v1778 = vadd.f32 %v1511, %v1741
  %v1779 = vadd.f32 %v1512, %v1745
  %v1780 = vadd.f32 %v1513, %v1747
  %v1781 = vadd.f32 %v1514, %v1751
  %v1782 = vadd.f32 %v1515, %v1753
  %v1783 = vadd.f32 %v1516, %v1757
  %v1784 = vadd.f32 %v1517, %v1759
  %v1785 = vadd.f32 %v1518, %v1763
  %v1786 = vadd.f32 %v1519, %v1765
  %v1787 = vadd.f32 %v1520, %v1769
  %v1788 = vadd.f32 %v1521, %v1771
  %v1789 = vrot.slane %v746, 4
  %v1790 = vrot.slane %v748, 4
  %v1791 = vsel %vm229, %v1789, %v1790
  %v1792 = vrot.slane %v747, 4
  %v1793 = vrot.slane %v749, 4
  %v1794 = vsel %vm229, %v1792, %v1793
  %v1795 = vrot.slane %v750, 4
  %v1796 = vrot.slane %v752, 4
  %v1797 = vsel %vm229, %v1795, %v1796
  %v1798 = vrot.slane %v751, 4
  %v1799 = vrot.slane %v753, 4
  %v1800 = vsel %vm229, %v1798, %v1799
  %v1801 = vrot.slane %v754, 4
  %v1802 = vrot.slane %v756, 4
  %v1803 = vsel %vm229, %v1801, %v1802
  %v1804 = vrot.slane %v755, 4
  %v1805 = vrot.slane %v757, 4
  %v1806 = vsel %vm229, %v1804, %v1805
  %v1807 = vrot.slane %v758, 4
  %v1808 = vrot.slane %v760, 4
  %v1809 = vsel %vm229, %v1807, %v1808
  %v1810 = vrot.slane %v759, 4
  %v1811 = vrot.slane %v761, 4
  %v1812 = vsel %vm229, %v1810, %v1811
  %v1813 = vrot.slane %v762, 4
  %v1814 = vrot.slane %v764, 4
  %v1815 = vsel %vm229, %v1813, %v1814
  %v1816 = vrot.slane %v763, 4
  %v1817 = vrot.slane %v765, 4
  %v1818 = vsel %vm229, %v1816, %v1817
  %v1819 = vrot.slane %v766, 4
  %v1820 = vrot.slane %v768, 4
  %v1821 = vsel %vm229, %v1819, %v1820
  %v1822 = vrot.slane %v767, 4
  %v1823 = vrot.slane %v769, 4
  %v1824 = vsel %vm229, %v1822, %v1823
  %v1825 = vrot.slane %v770, 4
  %v1826 = vrot.slane %v772, 4
  %v1827 = vsel %vm229, %v1825, %v1826
  %v1828 = vrot.slane %v771, 4
  %v1829 = vrot.slane %v773, 4
  %v1830 = vsel %vm229, %v1828, %v1829
  %v1831 = vrot.slane %v774, 4
  %v1832 = vrot.slane %v776, 4
  %v1833 = vsel %vm229, %v1831, %v1832
  %v1834 = vrot.slane %v775, 4
  %v1835 = vrot.slane %v777, 4
  %v1836 = vsel %vm229, %v1834, %v1835
  %s1845 = scalar_lea.vmem %s3, 1856
  %v1846 = vld [vmem:[%s1845] sm:$0xff]
  %v1847 = vld [vmem:[%s1845 + $0x8] sm:$0xff]
  %v1848 = vld [vmem:[%s1845 + $0x10] sm:$0xff]
  %v1849 = vld [vmem:[%s1845 + $0x18] sm:$0xff]
  %v1850 = vld [vmem:[%s1845 + $0x20] sm:$0xff]
  %v1851 = vld [vmem:[%s1845 + $0x28] sm:$0xff]
  %v1852 = vld [vmem:[%s1845 + $0x30] sm:$0xff]
  %v1853 = vld [vmem:[%s1845 + $0x38] sm:$0xff]
  %v1854 = vld [vmem:[%s1845 + $0x40] sm:$0xff]
  %v1855 = vld [vmem:[%s1845 + $0x48] sm:$0xff]
  %v1856 = vld [vmem:[%s1845 + $0x50] sm:$0xff]
  %v1857 = vld [vmem:[%s1845 + $0x58] sm:$0xff]
  %v1858 = vld [vmem:[%s1845 + $0x60] sm:$0xff]
  %v1859 = vld [vmem:[%s1845 + $0x68] sm:$0xff]
  %v1860 = vld [vmem:[%s1845 + $0x70] sm:$0xff]
  %v1861 = vld [vmem:[%s1845 + $0x78] sm:$0xff]
  %v1862 = vld [vmem:[%s1845 + $0x80] sm:$0xff]
  %v1863 = vld [vmem:[%s1845 + $0x88] sm:$0xff]
  %v1864 = vld [vmem:[%s1845 + $0x90] sm:$0xff]
  %v1865 = vld [vmem:[%s1845 + $0x98] sm:$0xff]
  %v1866 = vld [vmem:[%s1845 + $0xa0] sm:$0xff]
  %v1867 = vld [vmem:[%s1845 + $0xa8] sm:$0xff]
  %v1868 = vld [vmem:[%s1845 + $0xb0] sm:$0xff]
  %v1869 = vld [vmem:[%s1845 + $0xb8] sm:$0xff]
  %v1870 = vld [vmem:[%s1845 + $0xc0] sm:$0xff]
  %v1871 = vld [vmem:[%s1845 + $0xc8] sm:$0xff]
  %v1872 = vld [vmem:[%s1845 + $0xd0] sm:$0xff]
  %v1873 = vld [vmem:[%s1845 + $0xd8] sm:$0xff]
  %v1874 = vld [vmem:[%s1845 + $0xe0] sm:$0xff]
  %v1875 = vld [vmem:[%s1845 + $0xe8] sm:$0xff]
  %v1876 = vld [vmem:[%s1845 + $0xf0] sm:$0xff]
  %v1877 = vld [vmem:[%s1845 + $0xf8] sm:$0xff]
  %v1878 = vld [vmem:[%s1845 + $0x100] sm:$0xff]
  %v1879 = vld [vmem:[%s1845 + $0x108] sm:$0xff]
  %v1880 = vld [vmem:[%s1845 + $0x110] sm:$0xff]
  %v1881 = vld [vmem:[%s1845 + $0x118] sm:$0xff]
  %v1882 = vld [vmem:[%s1845 + $0x120] sm:$0xff]
  %v1883 = vld [vmem:[%s1845 + $0x128] sm:$0xff]
  %v1884 = vld [vmem:[%s1845 + $0x130] sm:$0xff]
  %v1885 = vld [vmem:[%s1845 + $0x138] sm:$0xff]
  %v1886 = vld [vmem:[%s1845 + $0x140] sm:$0xff]
  %v1887 = vld [vmem:[%s1845 + $0x148] sm:$0xff]
  %v1888 = vld [vmem:[%s1845 + $0x150] sm:$0xff]
  %v1889 = vld [vmem:[%s1845 + $0x158] sm:$0xff]
  %v1890 = vld [vmem:[%s1845 + $0x160] sm:$0xff]
  %v1891 = vld [vmem:[%s1845 + $0x168] sm:$0xff]
  %v1892 = vld [vmem:[%s1845 + $0x170] sm:$0xff]
  %v1893 = vld [vmem:[%s1845 + $0x178] sm:$0xff]
  %v1894 = vld [vmem:[%s1845 + $0x180] sm:$0xff]
  %v1895 = vld [vmem:[%s1845 + $0x188] sm:$0xff]
  %v1896 = vld [vmem:[%s1845 + $0x190] sm:$0xff]
  %v1897 = vld [vmem:[%s1845 + $0x198] sm:$0xff]
  %v1898 = vld [vmem:[%s1845 + $0x1a0] sm:$0xff]
  %v1899 = vld [vmem:[%s1845 + $0x1a8] sm:$0xff]
  %v1900 = vld [vmem:[%s1845 + $0x1b0] sm:$0xff]
  %v1901 = vld [vmem:[%s1845 + $0x1b8] sm:$0xff]
  %v1902 = vld [vmem:[%s1845 + $0x1c0] sm:$0x3f]
  %v1903 = vld [vmem:[%s1845 + $0x1c8] sm:$0x3f]
  %v1904 = vsel %vm984, %v1794, 0
  %v1906 = vsel %vm984, %v1800, 0
  %v1908 = vsel %vm984, %v1806, 0
  %v1910 = vsel %vm984, %v1812, 0
  %v1912 = vsel %vm984, %v1818, 0
  %v1914 = vsel %vm984, %v1824, 0
  %v1916 = vsel %vm984, %v1830, 0
  %v1918 = vsel %vm984, %v1836, 0
  %v1921 = vsel %vm1001, %v1902, 0
  %v1924 = vsel %vm1001, %v1903, 0
  %1926 = vmatprep.subr.mxu0 %v1847
  %1927 = vmatpush1.msra.mxu0 %v1846
  %1928 = vmatprep.subr.mxu0 %v1849
  %1929 = vmatpush1.msra.mxu0 %v1848
  %1930 = vmatprep.subr.mxu0 %v1851
  %1931 = vmatpush1.msra.mxu0 %v1850
  %1932 = vmatprep.subr.mxu0 %v1853
  %1933 = vmatpush1.msra.mxu0 %v1852
  %1934 = vmatprep.subr.mxu0 %v1855
  %1935 = vmatpush1.msra.mxu0 %v1854
  %1936 = vmatprep.subr.mxu0 %v1857
  %1937 = vmatpush1.msra.mxu0 %v1856
  %1938 = vmatprep.subr.mxu0 %v1859
  %1939 = vmatpush1.msra.mxu0 %v1858
  %1940 = vmatprep.subr.mxu0 %v1861
  %1941 = vmatpush1.msra.mxu0 %v1860
  %1942 = vmatprep.subr.mxu0 %v1863
  %1943 = vmatpush1.msra.mxu0 %v1862
  %1944 = vmatprep.subr.mxu0 %v1865
  %1945 = vmatpush1.msra.mxu0 %v1864
  %1946 = vmatprep.subr.mxu0 %v1867
  %1947 = vmatpush1.msra.mxu0 %v1866
  %1948 = vmatprep.subr.mxu0 %v1869
  %1949 = vmatpush1.msra.mxu0 %v1868
  %1950 = vmatprep.subr.mxu0 %v1871
  %1951 = vmatpush1.msra.mxu0 %v1870
  %1952 = vmatprep.subr.mxu0 %v1873
  %1953 = vmatpush1.msra.mxu0 %v1872
  %1954 = vmatprep.subr.mxu0 %v1875
  %1955 = vmatpush1.msra.mxu0 %v1874
  %1956 = vmatprep.subr.mxu0 %v1877
  %1957 = vmatpush1.msra.mxu0 %v1876
  %1958 = vmatprep.subr.mxu0 %v1879
  %1959 = vmatpush1.msra.mxu0 %v1878
  %1960 = vmatprep.subr.mxu0 %v1881
  %1961 = vmatpush1.msra.mxu0 %v1880
  %1962 = vmatprep.subr.mxu0 %v1883
  %1963 = vmatpush1.msra.mxu0 %v1882
  %1964 = vmatprep.subr.mxu0 %v1885
  %1965 = vmatpush1.msra.mxu0 %v1884
  %1966 = vmatprep.subr.mxu0 %v1887
  %1967 = vmatpush1.msra.mxu0 %v1886
  %1968 = vmatprep.subr.mxu0 %v1889
  %1969 = vmatpush1.msra.mxu0 %v1888
  %1970 = vmatprep.subr.mxu0 %v1891
  %1971 = vmatpush1.msra.mxu0 %v1890
  %1972 = vmatprep.subr.mxu0 %v1893
  %1973 = vmatpush1.msra.mxu0 %v1892
  %1974 = vmatprep.subr.mxu0 %v1895
  %1975 = vmatpush1.msra.mxu0 %v1894
  %1976 = vmatprep.subr.mxu0 %v1897
  %1977 = vmatpush1.msra.mxu0 %v1896
  %1978 = vmatprep.subr.mxu0 %v1899
  %1979 = vmatpush1.msra.mxu0 %v1898
  %1980 = vmatprep.subr.mxu0 %v1901
  %1981 = vmatpush1.msra.mxu0 %v1900
  %1982 = vmatprep.subr.mxu0 %v1924
  %1983 = vmatpush1.msra.mxu0 %v1921
  %1984 = vmatprep.subr.mxu0 0.0
  %1985 = vmatpush1.msra.mxu0 0.0
  %1986 = vmatprep.subr.mxu0 0.0
  %1987 = vmatpush1.msra.mxu0 0.0
  %1988 = vmatprep.subr.mxu0 0.0
  %1989 = vmatpush1.msra.mxu0 0.0
  %1990 = vmatprep.mubr.f32.mxu0 %v1904
  %1991 = vmatmul.mubr.f32.gmra.mrb[0].mxu0 %v1791
  %v1992 = vpop.f32.mrb[0].mxu0
  %v1993 = vadd.f32 0.0, %v1992
  %v1994 = vpop.f32.mrb[0].mxu0
  %v1995 = vadd.f32 0.0, %v1994
  %1996 = vmatprep.mubr.f32.mxu0 %v1906
  %1997 = vmatmul.mubr.f32.gmra.mrb[0].mxu0 %v1797
  %v1998 = vpop.f32.mrb[0].mxu0
  %v1999 = vadd.f32 0.0, %v1998
  %v2000 = vpop.f32.mrb[0].mxu0
  %v2001 = vadd.f32 0.0, %v2000
  %2002 = vmatprep.mubr.f32.mxu0 %v1908
  %2003 = vmatmul.mubr.f32.gmra.mrb[0].mxu0 %v1803
  %v2004 = vpop.f32.mrb[0].mxu0
  %v2005 = vadd.f32 0.0, %v2004
  %v2006 = vpop.f32.mrb[0].mxu0
  %v2007 = vadd.f32 0.0, %v2006
  %2008 = vmatprep.mubr.f32.mxu0 %v1910
  %2009 = vmatmul.mubr.f32.gmra.mrb[0].mxu0 %v1809
  %v2010 = vpop.f32.mrb[0].mxu0
  %v2011 = vadd.f32 0.0, %v2010
  %v2012 = vpop.f32.mrb[0].mxu0
  %v2013 = vadd.f32 0.0, %v2012
  %2014 = vmatprep.mubr.f32.mxu0 %v1912
  %2015 = vmatmul.mubr.f32.gmra.mrb[0].mxu0 %v1815
  %v2016 = vpop.f32.mrb[0].mxu0
  %v2017 = vadd.f32 0.0, %v2016
  %v2018 = vpop.f32.mrb[0].mxu0
  %v2019 = vadd.f32 0.0, %v2018
  %2020 = vmatprep.mubr.f32.mxu0 %v1914
  %2021 = vmatmul.mubr.f32.gmra.mrb[0].mxu0 %v1821
  %v2022 = vpop.f32.mrb[0].mxu0
  %v2023 = vadd.f32 0.0, %v2022
  %v2024 = vpop.f32.mrb[0].mxu0
  %v2025 = vadd.f32 0.0, %v2024
  %2026 = vmatprep.mubr.f32.mxu0 %v1916
  %2027 = vmatmul.mubr.f32.gmra.mrb[0].mxu0 %v1827
  %v2028 = vpop.f32.mrb[0].mxu0
  %v2029 = vadd.f32 0.0, %v2028
  %v2030 = vpop.f32.mrb[0].mxu0
  %v2031 = vadd.f32 0.0, %v2030
  %2032 = vmatprep.mubr.f32.mxu0 %v1918
  %2033 = vmatmul.mubr.f32.gmra.mrb[0].mxu0 %v1833
  %v2034 = vpop.f32.mrb[0].mxu0
  %v2035 = vadd.f32 0.0, %v2034
  %v2036 = vpop.f32.mrb[0].mxu0
  %v2037 = vadd.f32 0.0, %v2036
  %2038 = vdwg.mxu0
  %v2039 = vadd.f32 %v1773, %v1993
  %v2040 = vadd.f32 %v1774, %v1995
  %v2041 = vadd.f32 %v1775, %v1999
  %v2042 = vadd.f32 %v1776, %v2001
  %v2043 = vadd.f32 %v1777, %v2005
  %v2044 = vadd.f32 %v1778, %v2007
  %v2045 = vadd.f32 %v1779, %v2011
  %v2046 = vadd.f32 %v1780, %v2013
  %v2047 = vadd.f32 %v1781, %v2017
  %v2048 = vadd.f32 %v1782, %v2019
  %v2049 = vadd.f32 %v1783, %v2023
  %v2050 = vadd.f32 %v1784, %v2025
  %v2051 = vadd.f32 %v1785, %v2029
  %v2052 = vadd.f32 %v1786, %v2031
  %v2053 = vadd.f32 %v1787, %v2035
  %v2054 = vadd.f32 %v1788, %v2037
  %2071 = vrot.lane.b32.xlu0 %v2039, 108
  %v2072 = vpop.permute.xlu0 %2071
  %2073 = vrot.lane.b32.xlu0 %v2040, 108
  %v2074 = vpop.permute.xlu0 %2073
  %2075 = vrot.lane.b32.xlu0 %v2041, 108
  %v2076 = vpop.permute.xlu0 %2075
  %2077 = vrot.lane.b32.xlu0 %v2042, 108
  %v2078 = vpop.permute.xlu0 %2077
  %2079 = vrot.lane.b32.xlu0 %v2043, 108
  %v2080 = vpop.permute.xlu0 %2079
  %2081 = vrot.lane.b32.xlu0 %v2044, 108
  %v2082 = vpop.permute.xlu0 %2081
  %2083 = vrot.lane.b32.xlu0 %v2045, 108
  %v2084 = vpop.permute.xlu0 %2083
  %2085 = vrot.lane.b32.xlu0 %v2046, 108
  %v2086 = vpop.permute.xlu0 %2085
  %2087 = vrot.lane.b32.xlu0 %v2047, 108
  %v2088 = vpop.permute.xlu0 %2087
  %2089 = vrot.lane.b32.xlu0 %v2048, 108
  %v2090 = vpop.permute.xlu0 %2089
  %2091 = vrot.lane.b32.xlu0 %v2049, 108
  %v2092 = vpop.permute.xlu0 %2091
  %2093 = vrot.lane.b32.xlu0 %v2050, 108
  %v2094 = vpop.permute.xlu0 %2093
  %2095 = vrot.lane.b32.xlu0 %v2051, 108
  %v2096 = vpop.permute.xlu0 %2095
  %2097 = vrot.lane.b32.xlu0 %v2052, 108
  %v2098 = vpop.permute.xlu0 %2097
  %2099 = vrot.lane.b32.xlu0 %v2053, 108
  %v2100 = vpop.permute.xlu0 %2099
  %2101 = vrot.lane.b32.xlu0 %v2054, 108
  %v2102 = vpop.permute.xlu0 %2101
  %vm2103 = vcmask 883712
  %v2104 = vsel %vm2103, %v2072, %v2074
  %v2105 = vsel %vm2103, %v2076, %v2078
  %v2106 = vsel %vm2103, %v2080, %v2082
  %v2107 = vsel %vm2103, %v2084, %v2086
  %v2108 = vsel %vm2103, %v2088, %v2090
  %v2109 = vsel %vm2103, %v2092, %v2094
  %v2110 = vsel %vm2103, %v2096, %v2098
  %v2111 = vsel %vm2103, %v2100, %v2102
  %v2128 = vmax.f32 %v2039, %v2104
  %v2129 = vmax.f32 %v2040, %v2074
  %v2130 = vmax.f32 %v2041, %v2105
  %v2131 = vmax.f32 %v2042, %v2078
  %v2132 = vmax.f32 %v2043, %v2106
  %v2133 = vmax.f32 %v2044, %v2082
  %v2134 = vmax.f32 %v2045, %v2107
  %v2135 = vmax.f32 %v2046, %v2086
  %v2136 = vmax.f32 %v2047, %v2108
  %v2137 = vmax.f32 %v2048, %v2090
  %v2138 = vmax.f32 %v2049, %v2109
  %v2139 = vmax.f32 %v2050, %v2094
  %v2140 = vmax.f32 %v2051, %v2110
  %v2141 = vmax.f32 %v2052, %v2098
  %v2142 = vmax.f32 %v2053, %v2111
  %v2143 = vmax.f32 %v2054, %v2102
  %v2144 = vld [vmem:[%s4] sm:$0x3]
  %v2146 = vlaneseq
  %v2147 = vshrl.u32 %v2146, 7
  %v2148 = vsub.s32 0, %v2147
  %v2149 = vrot.slane %v2144, %v2148
  %v2150 = vlaneseq
  %v2151 = vshrl.u32 %v2150, 7
  %v2152 = vsub.s32 1, %v2151
  %v2153 = vrot.slane %v2144, %v2152
  %v2156 = vadd.f32 %v2128, %v2149
  %v2157 = vadd.f32 %v2129, %v2153
  %v2158 = vadd.f32 %v2130, %v2149
  %v2159 = vadd.f32 %v2131, %v2153
  %v2160 = vadd.f32 %v2132, %v2149
  %v2161 = vadd.f32 %v2133, %v2153
  %v2162 = vadd.f32 %v2134, %v2149
  %v2163 = vadd.f32 %v2135, %v2153
  %v2164 = vadd.f32 %v2136, %v2149
  %v2165 = vadd.f32 %v2137, %v2153
  %v2166 = vadd.f32 %v2138, %v2149
  %v2167 = vadd.f32 %v2139, %v2153
  %v2168 = vadd.f32 %v2140, %v2149
  %v2169 = vadd.f32 %v2141, %v2153
  %v2170 = vadd.f32 %v2142, %v2149
  %v2171 = vadd.f32 %v2143, %v2153
  %v2172 = vmax.f32 %v2156, 0.0
  %v2173 = vmax.f32 %v2157, 0.0
  %v2174 = vmax.f32 %v2158, 0.0
  %v2175 = vmax.f32 %v2159, 0.0
  %v2176 = vmax.f32 %v2160, 0.0
  %v2177 = vmax.f32 %v2161, 0.0
  %v2178 = vmax.f32 %v2162, 0.0
  %v2179 = vmax.f32 %v2163, 0.0
  %v2180 = vmax.f32 %v2164, 0.0
  %v2181 = vmax.f32 %v2165, 0.0
  %v2182 = vmax.f32 %v2166, 0.0
  %v2183 = vmax.f32 %v2167, 0.0
  %v2184 = vmax.f32 %v2168, 0.0
  %v2185 = vmax.f32 %v2169, 0.0
  %v2186 = vmax.f32 %v2170, 0.0
  %v2187 = vmax.f32 %v2171, 0.0
  %v2188 = vld [vmem:[%s6] sm:$0x1]
  %v2205 = vrot.slane %v2172, 1
  %v2206 = vrot.slane %v2173, 1
  %v2207 = vrot.slane %v2174, 1
  %v2208 = vrot.slane %v2175, 1
  %v2209 = vrot.slane %v2176, 1
  %v2210 = vrot.slane %v2177, 1
  %v2211 = vrot.slane %v2178, 1
  %v2212 = vrot.slane %v2179, 1
  %v2213 = vrot.slane %v2180, 1
  %v2214 = vrot.slane %v2181, 1
  %v2215 = vrot.slane %v2182, 1
  %v2216 = vrot.slane %v2183, 1
  %v2217 = vrot.slane %v2184, 1
  %v2218 = vrot.slane %v2185, 1
  %v2219 = vrot.slane %v2186, 1
  %v2220 = vrot.slane %v2187, 1
  %v2237 = vmax.f32 %v2172, %v2205
  %v2238 = vmax.f32 %v2173, %v2206
  %v2239 = vmax.f32 %v2174, %v2207
  %v2240 = vmax.f32 %v2175, %v2208
  %v2241 = vmax.f32 %v2176, %v2209
  %v2242 = vmax.f32 %v2177, %v2210
  %v2243 = vmax.f32 %v2178, %v2211
  %v2244 = vmax.f32 %v2179, %v2212
  %v2245 = vmax.f32 %v2180, %v2213
  %v2246 = vmax.f32 %v2181, %v2214
  %v2247 = vmax.f32 %v2182, %v2215
  %v2248 = vmax.f32 %v2183, %v2216
  %v2249 = vmax.f32 %v2184, %v2217
  %v2250 = vmax.f32 %v2185, %v2218
  %v2251 = vmax.f32 %v2186, %v2219
  %v2252 = vmax.f32 %v2187, %v2220
  %v2253 = vld [vmem:[%s5] sm:$0xff]
  %v2254 = vld [vmem:[%s5 + $0x8] sm:$0xff]
  %v2255 = vld [vmem:[%s5 + $0x10] sm:$0xff]
  %v2256 = vld [vmem:[%s5 + $0x18] sm:$0xff]
  %v2257 = vld [vmem:[%s5 + $0x20] sm:$0xff]
  %v2258 = vld [vmem:[%s5 + $0x28] sm:$0xff]
  %v2259 = vld [vmem:[%s5 + $0x30] sm:$0xff]
  %v2260 = vld [vmem:[%s5 + $0x38] sm:$0xff]
  %v2261 = vld [vmem:[%s5 + $0x40] sm:$0xff]
  %v2262 = vld [vmem:[%s5 + $0x48] sm:$0xff]
  %v2263 = vld [vmem:[%s5 + $0x50] sm:$0xff]
  %v2264 = vld [vmem:[%s5 + $0x58] sm:$0xff]
  %v2265 = vld [vmem:[%s5 + $0x60] sm:$0xff]
  %v2266 = vld [vmem:[%s5 + $0x68] sm:$0xff]
  %v2267 = vld [vmem:[%s5 + $0x70] sm:$0xff]
  %v2268 = vld [vmem:[%s5 + $0x78] sm:$0xff]
  %v2269 = vld [vmem:[%s5 + $0x80] sm:$0xff]
  %v2270 = vld [vmem:[%s5 + $0x88] sm:$0xf]
  %v2287 = vrot.slane %v2239, 7
  %vm2288 = vcmask 1041409
  %v2289 = vsel %vm2288, %v2287, %v2237
  %v2290 = vrot.slane %v2241, 6
  %vm2291 = vcmask 1042434
  %v2292 = vsel %vm2291, %v2290, %v2289
  %v2293 = vrot.slane %v2243, 5
  %vm2294 = vcmask 1043459
  %v2295 = vsel %vm2294, %v2293, %v2292
  %v2296 = vrot.slane %v2245, 4
  %vm2297 = vcmask 1044484
  %v2298 = vsel %vm2297, %v2296, %v2295
  %v2299 = vrot.slane %v2247, 3
  %vm2300 = vcmask 1045509
  %v2301 = vsel %vm2300, %v2299, %v2298
  %v2302 = vrot.slane %v2249, 2
  %vm2303 = vcmask 1046534
  %v2304 = vsel %vm2303, %v2302, %v2301
  %v2305 = vrot.slane %v2251, 1
  %vm2306 = vcmask 1047559
  %v2307 = vsel %vm2306, %v2305, %v2304
  %v2308 = vrot.slane %v2240, 7
  %v2309 = vsel %vm2288, %v2308, %v2238
  %v2310 = vrot.slane %v2242, 6
  %v2311 = vsel %vm2291, %v2310, %v2309
  %v2312 = vrot.slane %v2244, 5
  %v2313 = vsel %vm2294, %v2312, %v2311
  %v2314 = vrot.slane %v2246, 4
  %v2315 = vsel %vm2297, %v2314, %v2313
  %v2316 = vrot.slane %v2248, 3
  %v2317 = vsel %vm2300, %v2316, %v2315
  %v2318 = vrot.slane %v2250, 2
  %v2319 = vsel %vm2303, %v2318, %v2317
  %v2320 = vrot.slane %v2252, 1
  %v2321 = vsel %vm2306, %v2320, %v2319
  %v2323 = vsel %vm132, %v2321, 0
  %v2326 = vsel %vm229, %v2270, 0
  %2328 = vmatprep.subr.mxu0 0.0
  %2329 = vmatpush1.msra.mxu0 %v2253
  %2330 = vmatprep.subr.mxu0 0.0
  %2331 = vmatpush1.msra.mxu0 %v2254
  %2332 = vmatprep.subr.mxu0 0.0
  %2333 = vmatpush1.msra.mxu0 %v2255
  %2334 = vmatprep.subr.mxu0 0.0
  %2335 = vmatpush1.msra.mxu0 %v2256
  %2336 = vmatprep.subr.mxu0 0.0
  %2337 = vmatpush1.msra.mxu0 %v2257
  %2338 = vmatprep.subr.mxu0 0.0
  %2339 = vmatpush1.msra.mxu0 %v2258
  %2340 = vmatprep.subr.mxu0 0.0
  %2341 = vmatpush1.msra.mxu0 %v2259
  %2342 = vmatprep.subr.mxu0 0.0
  %2343 = vmatpush1.msra.mxu0 %v2260
  %2344 = vmatprep.subr.mxu0 0.0
  %2345 = vmatpush1.msra.mxu0 %v2261
  %2346 = vmatprep.subr.mxu0 0.0
  %2347 = vmatpush1.msra.mxu0 %v2262
  %2348 = vmatprep.subr.mxu0 0.0
  %2349 = vmatpush1.msra.mxu0 %v2263
  %2350 = vmatprep.subr.mxu0 0.0
  %2351 = vmatpush1.msra.mxu0 %v2264
  %2352 = vmatprep.subr.mxu0 0.0
  %2353 = vmatpush1.msra.mxu0 %v2265
  %2354 = vmatprep.subr.mxu0 0.0
  %2355 = vmatpush1.msra.mxu0 %v2266
  %2356 = vmatprep.subr.mxu0 0.0
  %2357 = vmatpush1.msra.mxu0 %v2267
  %2358 = vmatprep.subr.mxu0 0.0
  %2359 = vmatpush1.msra.mxu0 %v2268
  %2360 = vmatprep.subr.mxu0 0.0
  %2361 = vmatpush1.msra.mxu0 %v2269
  %2362 = vmatprep.subr.mxu0 0.0
  %2363 = vmatpush1.msra.mxu0 %v2326
  %2364 = vmatprep.subr.mxu0 0.0
  %2365 = vmatpush1.msra.mxu0 0.0
  %2366 = vmatprep.subr.mxu0 0.0
  %2367 = vmatpush1.msra.mxu0 0.0
  %2368 = vmatprep.subr.mxu0 0.0
  %2369 = vmatpush1.msra.mxu0 0.0
  %2370 = vmatprep.subr.mxu0 0.0
  %2371 = vmatpush1.msra.mxu0 0.0
  %2372 = vmatprep.subr.mxu0 0.0
  %2373 = vmatpush1.msra.mxu0 0.0
  %2374 = vmatprep.subr.mxu0 0.0
  %2375 = vmatpush1.msra.mxu0 0.0
  %2376 = vmatprep.subr.mxu0 0.0
  %2377 = vmatpush1.msra.mxu0 0.0
  %2378 = vmatprep.subr.mxu0 0.0
  %2379 = vmatpush1.msra.mxu0 0.0
  %2380 = vmatprep.subr.mxu0 0.0
  %2381 = vmatpush1.msra.mxu0 0.0
  %2382 = vmatprep.subr.mxu0 0.0
  %2383 = vmatpush1.msra.mxu0 0.0
  %2384 = vmatprep.subr.mxu0 0.0
  %2385 = vmatpush1.msra.mxu0 0.0
  %2386 = vmatprep.subr.mxu0 0.0
  %2387 = vmatpush1.msra.mxu0 0.0
  %2388 = vmatprep.subr.mxu0 0.0
  %2389 = vmatpush1.msra.mxu0 0.0
  %2390 = vmatprep.subr.mxu0 0.0
  %2391 = vmatpush1.msra.mxu0 0.0
  %2392 = vmatprep.mubr.f32.mxu0 %v2323
  %2393 = vmatmul.mubr.f32.gmra.mrb[0].mxu0 %v2307
  %v2394 = vpop.f32.mrb[0].mxu0
  %v2395 = vadd.f32 0.0, %v2394
  %v2396 = vpop.f32.mrb[0].mxu0
  %2397 = vdwg.mxu0
  %v2399 = vlaneseq
  %v2400 = vshrl.u32 %v2399, 7
  %v2401 = vsub.s32 0, %v2400
  %v2402 = vrot.slane %v2188, %v2401
  %v2404 = vadd.f32 %v2402, %v2395
  %s2405 = scalar_lea.vmem %s5, 144
  %v2406 = vld [vmem:[%s2405] sm:$0xff]
  %v2407 = vld [vmem:[%s2405 + $0x8] sm:$0xff]
  %v2408 = vld [vmem:[%s2405 + $0x10] sm:$0xff]
  %v2409 = vld [vmem:[%s2405 + $0x18] sm:$0xff]
  %v2410 = vld [vmem:[%s2405 + $0x20] sm:$0xff]
  %v2411 = vld [vmem:[%s2405 + $0x28] sm:$0xff]
  %v2412 = vld [vmem:[%s2405 + $0x30] sm:$0xff]
  %v2413 = vld [vmem:[%s2405 + $0x38] sm:$0xff]
  %v2414 = vld [vmem:[%s2405 + $0x40] sm:$0xff]
  %v2415 = vld [vmem:[%s2405 + $0x48] sm:$0xff]
  %v2416 = vld [vmem:[%s2405 + $0x50] sm:$0xff]
  %v2417 = vld [vmem:[%s2405 + $0x58] sm:$0xff]
  %v2418 = vld [vmem:[%s2405 + $0x60] sm:$0xff]
  %v2419 = vld [vmem:[%s2405 + $0x68] sm:$0xff]
  %v2420 = vld [vmem:[%s2405 + $0x70] sm:$0xff]
  %v2421 = vld [vmem:[%s2405 + $0x78] sm:$0xff]
  %v2422 = vld [vmem:[%s2405 + $0x80] sm:$0xff]
  %v2423 = vld [vmem:[%s2405 + $0x88] sm:$0xf]
  %v2424 = vrot.slane %v2237, 2
  %v2425 = vrot.slane %v2239, 1
  %v2426 = vsel %vm2288, %v2425, %v2424
  %v2427 = vsel %vm2291, %v2241, %v2426
  %v2428 = vrot.slane %v2243, 7
  %v2429 = vsel %vm2294, %v2428, %v2427
  %v2430 = vrot.slane %v2245, 6
  %v2431 = vsel %vm2297, %v2430, %v2429
  %v2432 = vrot.slane %v2247, 5
  %v2433 = vsel %vm2300, %v2432, %v2431
  %v2434 = vrot.slane %v2249, 4
  %v2435 = vsel %vm2303, %v2434, %v2433
  %v2436 = vrot.slane %v2251, 3
  %v2437 = vsel %vm2306, %v2436, %v2435
  %v2438 = vrot.slane %v2238, 2
  %v2439 = vrot.slane %v2240, 1
  %v2440 = vsel %vm2288, %v2439, %v2438
  %v2441 = vsel %vm2291, %v2242, %v2440
  %v2442 = vrot.slane %v2244, 7
  %v2443 = vsel %vm2294, %v2442, %v2441
  %v2444 = vrot.slane %v2246, 6
  %v2445 = vsel %vm2297, %v2444, %v2443
  %v2446 = vrot.slane %v2248, 5
  %v2447 = vsel %vm2300, %v2446, %v2445
  %v2448 = vrot.slane %v2250, 4
  %v2449 = vsel %vm2303, %v2448, %v2447
  %v2450 = vrot.slane %v2252, 3
  %v2451 = vsel %vm2306, %v2450, %v2449
  %v2453 = vsel %vm132, %v2451, 0
  %v2456 = vsel %vm229, %v2423, 0
  %2458 = vmatprep.subr.mxu0 0.0
  %2459 = vmatpush1.msra.mxu0 %v2406
  %2460 = vmatprep.subr.mxu0 0.0
  %2461 = vmatpush1.msra.mxu0 %v2407
  %2462 = vmatprep.subr.mxu0 0.0
  %2463 = vmatpush1.msra.mxu0 %v2408
  %2464 = vmatprep.subr.mxu0 0.0
  %2465 = vmatpush1.msra.mxu0 %v2409
  %2466 = vmatprep.subr.mxu0 0.0
  %2467 = vmatpush1.msra.mxu0 %v2410
  %2468 = vmatprep.subr.mxu0 0.0
  %2469 = vmatpush1.msra.mxu0 %v2411
  %2470 = vmatprep.subr.mxu0 0.0
  %2471 = vmatpush1.msra.mxu0 %v2412
  %2472 = vmatprep.subr.mxu0 0.0
  %2473 = vmatpush1.msra.mxu0 %v2413
  %2474 = vmatprep.subr.mxu0 0.0
  %2475 = vmatpush1.msra.mxu0 %v2414
  %2476 = vmatprep.subr.mxu0 0.0
  %2477 = vmatpush1.msra.mxu0 %v2415
  %2478 = vmatprep.subr.mxu0 0.0
  %2479 = vmatpush1.msra.mxu0 %v2416
  %2480 = vmatprep.subr.mxu0 0.0
  %2481 = vmatpush1.msra.mxu0 %v2417
  %2482 = vmatprep.subr.mxu0 0.0
  %2483 = vmatpush1.msra.mxu0 %v2418
  %2484 = vmatprep.subr.mxu0 0.0
  %2485 = vmatpush1.msra.mxu0 %v2419
  %2486 = vmatprep.subr.mxu0 0.0
  %2487 = vmatpush1.msra.mxu0 %v2420
  %2488 = vmatprep.subr.mxu0 0.0
  %2489 = vmatpush1.msra.mxu0 %v2421
  %2490 = vmatprep.subr.mxu0 0.0
  %2491 = vmatpush1.msra.mxu0 %v2422
  %2492 = vmatprep.subr.mxu0 0.0
  %2493 = vmatpush1.msra.mxu0 %v2456
  %2494 = vmatprep.subr.mxu0 0.0
  %2495 = vmatpush1.msra.mxu0 0.0
  %2496 = vmatprep.subr.mxu0 0.0
  %2497 = vmatpush1.msra.mxu0 0.0
  %2498 = vmatprep.subr.mxu0 0.0
  %2499 = vmatpush1.msra.mxu0 0.0
  %2500 = vmatprep.subr.mxu0 0.0
  %2501 = vmatpush1.msra.mxu0 0.0
  %2502 = vmatprep.subr.mxu0 0.0
  %2503 = vmatpush1.msra.mxu0 0.0
  %2504 = vmatprep.subr.mxu0 0.0
  %2505 = vmatpush1.msra.mxu0 0.0
  %2506 = vmatprep.subr.mxu0 0.0
  %2507 = vmatpush1.msra.mxu0 0.0
  %2508 = vmatprep.subr.mxu0 0.0
  %2509 = vmatpush1.msra.mxu0 0.0
  %2510 = vmatprep.subr.mxu0 0.0
  %2511 = vmatpush1.msra.mxu0 0.0
  %2512 = vmatprep.subr.mxu0 0.0
  %2513 = vmatpush1.msra.mxu0 0.0
  %2514 = vmatprep.subr.mxu0 0.0
  %2515 = vmatpush1.msra.mxu0 0.0
  %2516 = vmatprep.subr.mxu0 0.0
  %2517 = vmatpush1.msra.mxu0 0.0
  %2518 = vmatprep.subr.mxu0 0.0
  %2519 = vmatpush1.msra.mxu0 0.0
  %2520 = vmatprep.subr.mxu0 0.0
  %2521 = vmatpush1.msra.mxu0 0.0
  %2522 = vmatprep.mubr.f32.mxu0 %v2453
  %2523 = vmatmul.mubr.f32.gmra.mrb[0].mxu0 %v2437
  %v2524 = vpop.f32.mrb[0].mxu0
  %v2525 = vadd.f32 0.0, %v2524
  %v2526 = vpop.f32.mrb[0].mxu0
  %2527 = vdwg.mxu0
  %v2528 = vadd.f32 %v2404, %v2525
  %s2529 = scalar_lea.vmem %s5, 288
  %v2530 = vld [vmem:[%s2529] sm:$0xff]
  %v2531 = vld [vmem:[%s2529 + $0x8] sm:$0xff]
  %v2532 = vld [vmem:[%s2529 + $0x10] sm:$0xff]
  %v2533 = vld [vmem:[%s2529 + $0x18] sm:$0xff]
  %v2534 = vld [vmem:[%s2529 + $0x20] sm:$0xff]
  %v2535 = vld [vmem:[%s2529 + $0x28] sm:$0xff]
  %v2536 = vld [vmem:[%s2529 + $0x30] sm:$0xff]
  %v2537 = vld [vmem:[%s2529 + $0x38] sm:$0xff]
  %v2538 = vld [vmem:[%s2529 + $0x40] sm:$0xff]
  %v2539 = vld [vmem:[%s2529 + $0x48] sm:$0xff]
  %v2540 = vld [vmem:[%s2529 + $0x50] sm:$0xff]
  %v2541 = vld [vmem:[%s2529 + $0x58] sm:$0xff]
  %v2542 = vld [vmem:[%s2529 + $0x60] sm:$0xff]
  %v2543 = vld [vmem:[%s2529 + $0x68] sm:$0xff]
  %v2544 = vld [vmem:[%s2529 + $0x70] sm:$0xff]
  %v2545 = vld [vmem:[%s2529 + $0x78] sm:$0xff]
  %v2546 = vld [vmem:[%s2529 + $0x80] sm:$0xff]
  %v2547 = vld [vmem:[%s2529 + $0x88] sm:$0xf]
  %v2548 = vrot.slane %v2237, 4
  %v2549 = vrot.slane %v2239, 3
  %v2550 = vsel %vm2288, %v2549, %v2548
  %v2551 = vrot.slane %v2241, 2
  %v2552 = vsel %vm2291, %v2551, %v2550
  %v2553 = vrot.slane %v2243, 1
  %v2554 = vsel %vm2294, %v2553, %v2552
  %v2555 = vsel %vm2297, %v2245, %v2554
  %v2556 = vrot.slane %v2247, 7
  %v2557 = vsel %vm2300, %v2556, %v2555
  %v2558 = vrot.slane %v2249, 6
  %v2559 = vsel %vm2303, %v2558, %v2557
  %v2560 = vrot.slane %v2251, 5
  %v2561 = vsel %vm2306, %v2560, %v2559
  %v2562 = vrot.slane %v2238, 4
  %v2563 = vrot.slane %v2240, 3
  %v2564 = vsel %vm2288, %v2563, %v2562
  %v2565 = vrot.slane %v2242, 2
  %v2566 = vsel %vm2291, %v2565, %v2564
  %v2567 = vrot.slane %v2244, 1
  %v2568 = vsel %vm2294, %v2567, %v2566
  %v2569 = vsel %vm2297, %v2246, %v2568
  %v2570 = vrot.slane %v2248, 7
  %v2571 = vsel %vm2300, %v2570, %v2569
  %v2572 = vrot.slane %v2250, 6
  %v2573 = vsel %vm2303, %v2572, %v2571
  %v2574 = vrot.slane %v2252, 5
  %v2575 = vsel %vm2306, %v2574, %v2573
  %v2577 = vsel %vm132, %v2575, 0
  %v2580 = vsel %vm229, %v2547, 0
  %2582 = vmatprep.subr.mxu0 0.0
  %2583 = vmatpush1.msra.mxu0 %v2530
  %2584 = vmatprep.subr.mxu0 0.0
  %2585 = vmatpush1.msra.mxu0 %v2531
  %2586 = vmatprep.subr.mxu0 0.0
  %2587 = vmatpush1.msra.mxu0 %v2532
  %2588 = vmatprep.subr.mxu0 0.0
  %2589 = vmatpush1.msra.mxu0 %v2533
  %2590 = vmatprep.subr.mxu0 0.0
  %2591 = vmatpush1.msra.mxu0 %v2534
  %2592 = vmatprep.subr.mxu0 0.0
  %2593 = vmatpush1.msra.mxu0 %v2535
  %2594 = vmatprep.subr.mxu0 0.0
  %2595 = vmatpush1.msra.mxu0 %v2536
  %2596 = vmatprep.subr.mxu0 0.0
  %2597 = vmatpush1.msra.mxu0 %v2537
  %2598 = vmatprep.subr.mxu0 0.0
  %2599 = vmatpush1.msra.mxu0 %v2538
  %2600 = vmatprep.subr.mxu0 0.0
  %2601 = vmatpush1.msra.mxu0 %v2539
  %2602 = vmatprep.subr.mxu0 0.0
  %2603 = vmatpush1.msra.mxu0 %v2540
  %2604 = vmatprep.subr.mxu0 0.0
  %2605 = vmatpush1.msra.mxu0 %v2541
  %2606 = vmatprep.subr.mxu0 0.0
  %2607 = vmatpush1.msra.mxu0 %v2542
  %2608 = vmatprep.subr.mxu0 0.0
  %2609 = vmatpush1.msra.mxu0 %v2543
  %2610 = vmatprep.subr.mxu0 0.0
  %2611 = vmatpush1.msra.mxu0 %v2544
  %2612 = vmatprep.subr.mxu0 0.0
  %2613 = vmatpush1.msra.mxu0 %v2545
  %2614 = vmatprep.subr.mxu0 0.0
  %2615 = vmatpush1.msra.mxu0 %v2546
  %2616 = vmatprep.subr.mxu0 0.0
  %2617 = vmatpush1.msra.mxu0 %v2580
  %2618 = vmatprep.subr.mxu0 0.0
  %2619 = vmatpush1.msra.mxu0 0.0
  %2620 = vmatprep.subr.mxu0 0.0
  %2621 = vmatpush1.msra.mxu0 0.0
  %2622 = vmatprep.subr.mxu0 0.0
  %2623 = vmatpush1.msra.mxu0 0.0
  %2624 = vmatprep.subr.mxu0 0.0
  %2625 = vmatpush1.msra.mxu0 0.0
  %2626 = vmatprep.subr.mxu0 0.0
  %2627 = vmatpush1.msra.mxu0 0.0
  %2628 = vmatprep.subr.mxu0 0.0
  %2629 = vmatpush1.msra.mxu0 0.0
  %2630 = vmatprep.subr.mxu0 0.0
  %2631 = vmatpush1.msra.mxu0 0.0
  %2632 = vmatprep.subr.mxu0 0.0
  %2633 = vmatpush1.msra.mxu0 0.0
  %2634 = vmatprep.subr.mxu0 0.0
  %2635 = vmatpush1.msra.mxu0 0.0
  %2636 = vmatprep.subr.mxu0 0.0
  %2637 = vmatpush1.msra.mxu0 0.0
  %2638 = vmatprep.subr.mxu0 0.0
  %2639 = vmatpush1.msra.mxu0 0.0
  %2640 = vmatprep.subr.mxu0 0.0
  %2641 = vmatpush1.msra.mxu0 0.0
  %2642 = vmatprep.subr.mxu0 0.0
  %2643 = vmatpush1.msra.mxu0 0.0
  %2644 = vmatprep.subr.mxu0 0.0
  %2645 = vmatpush1.msra.mxu0 0.0
  %2646 = vmatprep.mubr.f32.mxu0 %v2577
  %2647 = vmatmul.mubr.f32.gmra.mrb[0].mxu0 %v2561
  %v2648 = vpop.f32.mrb[0].mxu0
  %v2649 = vadd.f32 0.0, %v2648
  %v2650 = vpop.f32.mrb[0].mxu0
  %2651 = vdwg.mxu0
  %v2652 = vadd.f32 %v2528, %v2649
  %s2653 = scalar_lea.vmem %s5, 432
  %v2654 = vld [vmem:[%s2653] sm:$0xff]
  %v2655 = vld [vmem:[%s2653 + $0x8] sm:$0xff]
  %v2656 = vld [vmem:[%s2653 + $0x10] sm:$0xff]
  %v2657 = vld [vmem:[%s2653 + $0x18] sm:$0xff]
  %v2658 = vld [vmem:[%s2653 + $0x20] sm:$0xff]
  %v2659 = vld [vmem:[%s2653 + $0x28] sm:$0xff]
  %v2660 = vld [vmem:[%s2653 + $0x30] sm:$0xff]
  %v2661 = vld [vmem:[%s2653 + $0x38] sm:$0xff]
  %v2662 = vld [vmem:[%s2653 + $0x40] sm:$0xff]
  %v2663 = vld [vmem:[%s2653 + $0x48] sm:$0xff]
  %v2664 = vld [vmem:[%s2653 + $0x50] sm:$0xff]
  %v2665 = vld [vmem:[%s2653 + $0x58] sm:$0xff]
  %v2666 = vld [vmem:[%s2653 + $0x60] sm:$0xff]
  %v2667 = vld [vmem:[%s2653 + $0x68] sm:$0xff]
  %v2668 = vld [vmem:[%s2653 + $0x70] sm:$0xff]
  %v2669 = vld [vmem:[%s2653 + $0x78] sm:$0xff]
  %v2670 = vld [vmem:[%s2653 + $0x80] sm:$0xff]
  %v2671 = vld [vmem:[%s2653 + $0x88] sm:$0xf]
  %v2672 = vrot.slane %v2237, 6
  %v2673 = vrot.slane %v2239, 5
  %v2674 = vsel %vm2288, %v2673, %v2672
  %v2675 = vrot.slane %v2241, 4
  %v2676 = vsel %vm2291, %v2675, %v2674
  %v2677 = vrot.slane %v2243, 3
  %v2678 = vsel %vm2294, %v2677, %v2676
  %v2679 = vrot.slane %v2245, 2
  %v2680 = vsel %vm2297, %v2679, %v2678
  %v2681 = vrot.slane %v2247, 1
  %v2682 = vsel %vm2300, %v2681, %v2680
  %v2683 = vsel %vm2303, %v2249, %v2682
  %v2684 = vrot.slane %v2251, 7
  %v2685 = vsel %vm2306, %v2684, %v2683
  %v2686 = vrot.slane %v2238, 6
  %v2687 = vrot.slane %v2240, 5
  %v2688 = vsel %vm2288, %v2687, %v2686
  %v2689 = vrot.slane %v2242, 4
  %v2690 = vsel %vm2291, %v2689, %v2688
  %v2691 = vrot.slane %v2244, 3
  %v2692 = vsel %vm2294, %v2691, %v2690
  %v2693 = vrot.slane %v2246, 2
  %v2694 = vsel %vm2297, %v2693, %v2692
  %v2695 = vrot.slane %v2248, 1
  %v2696 = vsel %vm2300, %v2695, %v2694
  %v2697 = vsel %vm2303, %v2250, %v2696
  %v2698 = vrot.slane %v2252, 7
  %v2699 = vsel %vm2306, %v2698, %v2697
  %v2701 = vsel %vm132, %v2699, 0
  %v2704 = vsel %vm229, %v2671, 0
  %2706 = vmatprep.subr.mxu0 0.0
  %2707 = vmatpush1.msra.mxu0 %v2654
  %2708 = vmatprep.subr.mxu0 0.0
  %2709 = vmatpush1.msra.mxu0 %v2655
  %2710 = vmatprep.subr.mxu0 0.0
  %2711 = vmatpush1.msra.mxu0 %v2656
  %2712 = vmatprep.subr.mxu0 0.0
  %2713 = vmatpush1.msra.mxu0 %v2657
  %2714 = vmatprep.subr.mxu0 0.0
  %2715 = vmatpush1.msra.mxu0 %v2658
  %2716 = vmatprep.subr.mxu0 0.0
  %2717 = vmatpush1.msra.mxu0 %v2659
  %2718 = vmatprep.subr.mxu0 0.0
  %2719 = vmatpush1.msra.mxu0 %v2660
  %2720 = vmatprep.subr.mxu0 0.0
  %2721 = vmatpush1.msra.mxu0 %v2661
  %2722 = vmatprep.subr.mxu0 0.0
  %2723 = vmatpush1.msra.mxu0 %v2662
  %2724 = vmatprep.subr.mxu0 0.0
  %2725 = vmatpush1.msra.mxu0 %v2663
  %2726 = vmatprep.subr.mxu0 0.0
  %2727 = vmatpush1.msra.mxu0 %v2664
  %2728 = vmatprep.subr.mxu0 0.0
  %2729 = vmatpush1.msra.mxu0 %v2665
  %2730 = vmatprep.subr.mxu0 0.0
  %2731 = vmatpush1.msra.mxu0 %v2666
  %2732 = vmatprep.subr.mxu0 0.0
  %2733 = vmatpush1.msra.mxu0 %v2667
  %2734 = vmatprep.subr.mxu0 0.0
  %2735 = vmatpush1.msra.mxu0 %v2668
  %2736 = vmatprep.subr.mxu0 0.0
  %2737 = vmatpush1.msra.mxu0 %v2669
  %2738 = vmatprep.subr.mxu0 0.0
  %2739 = vmatpush1.msra.mxu0 %v2670
  %2740 = vmatprep.subr.mxu0 0.0
  %2741 = vmatpush1.msra.mxu0 %v2704
  %2742 = vmatprep.subr.mxu0 0.0
  %2743 = vmatpush1.msra.mxu0 0.0
  %2744 = vmatprep.subr.mxu0 0.0
  %2745 = vmatpush1.msra.mxu0 0.0
  %2746 = vmatprep.subr.mxu0 0.0
  %2747 = vmatpush1.msra.mxu0 0.0
  %2748 = vmatprep.subr.mxu0 0.0
  %2749 = vmatpush1.msra.mxu0 0.0
  %2750 = vmatprep.subr.mxu0 0.0
  %2751 = vmatpush1.msra.mxu0 0.0
  %2752 = vmatprep.subr.mxu0 0.0
  %2753 = vmatpush1.msra.mxu0 0.0
  %2754 = vmatprep.subr.mxu0 0.0
  %2755 = vmatpush1.msra.mxu0 0.0
  %2756 = vmatprep.subr.mxu0 0.0
  %2757 = vmatpush1.msra.mxu0 0.0
  %2758 = vmatprep.subr.mxu0 0.0
  %2759 = vmatpush1.msra.mxu0 0.0
  %2760 = vmatprep.subr.mxu0 0.0
  %2761 = vmatpush1.msra.mxu0 0.0
  %2762 = vmatprep.subr.mxu0 0.0
  %2763 = vmatpush1.msra.mxu0 0.0
  %2764 = vmatprep.subr.mxu0 0.0
  %2765 = vmatpush1.msra.mxu0 0.0
  %2766 = vmatprep.subr.mxu0 0.0
  %2767 = vmatpush1.msra.mxu0 0.0
  %2768 = vmatprep.subr.mxu0 0.0
  %2769 = vmatpush1.msra.mxu0 0.0
  %2770 = vmatprep.mubr.f32.mxu0 %v2701
  %2771 = vmatmul.mubr.f32.gmra.mrb[0].mxu0 %v2685
  %v2772 = vpop.f32.mrb[0].mxu0
  %v2773 = vadd.f32 0.0, %v2772
  %v2774 = vpop.f32.mrb[0].mxu0
  %2775 = vdwg.mxu0
  %v2776 = vadd.f32 %v2652, %v2773
  %v2777 = vmax.f32 %v2776, 0.0
  %v2778 = vld [vmem:[%s7] sm:$0xff]
  %v2779 = vld [vmem:[%s7 + $0x8] sm:$0xff]
  %v2780 = vld [vmem:[%s7 + $0x10] sm:$0xff]
  %v2781 = vld [vmem:[%s7 + $0x18] sm:$0xff]
  %v2782 = vld [vmem:[%s7 + $0x20] sm:$0xff]
  %v2783 = vld [vmem:[%s7 + $0x28] sm:$0xff]
  %v2784 = vld [vmem:[%s7 + $0x30] sm:$0x3]
  %v2785 = vld [vmem:[%s8] sm:$0x1]
  %v2787 = vlaneseq
  %v2788 = vshrl.u32 %v2787, 7
  %v2789 = vsub.s32 0, %v2788
  %v2790 = vrot.slane %v2785, %v2789
  %vm2792 = vcmask 408576
  %v2794 = vsel %vm2792, %v2777, 0
  %vm2796 = vcmask 1041408
  %v2798 = vsel %vm2796, %v2784, 0
  %2800 = vmatprep.subr.mxu0 0.0
  %2801 = vmatpush1.msra.mxu0 %v2778
  %2802 = vmatprep.subr.mxu0 0.0
  %2803 = vmatpush1.msra.mxu0 %v2779
  %2804 = vmatprep.subr.mxu0 0.0
  %2805 = vmatpush1.msra.mxu0 %v2780
  %2806 = vmatprep.subr.mxu0 0.0
  %2807 = vmatpush1.msra.mxu0 %v2781
  %2808 = vmatprep.subr.mxu0 0.0
  %2809 = vmatpush1.msra.mxu0 %v2782
  %2810 = vmatprep.subr.mxu0 0.0
  %2811 = vmatpush1.msra.mxu0 %v2783
  %2812 = vmatprep.subr.mxu0 0.0
  %2813 = vmatpush1.msra.mxu0 %v2798
  %2814 = vmatprep.subr.mxu0 0.0
  %2815 = vmatpush1.msra.mxu0 0.0
  %2816 = vmatprep.subr.mxu0 0.0
  %2817 = vmatpush1.msra.mxu0 0.0
  %2818 = vmatprep.subr.mxu0 0.0
  %2819 = vmatpush1.msra.mxu0 0.0
  %2820 = vmatprep.subr.mxu0 0.0
  %2821 = vmatpush1.msra.mxu0 0.0
  %2822 = vmatprep.subr.mxu0 0.0
  %2823 = vmatpush1.msra.mxu0 0.0
  %2824 = vmatprep.subr.mxu0 0.0
  %2825 = vmatpush1.msra.mxu0 0.0
  %2826 = vmatprep.subr.mxu0 0.0
  %2827 = vmatpush1.msra.mxu0 0.0
  %2828 = vmatprep.subr.mxu0 0.0
  %2829 = vmatpush1.msra.mxu0 0.0
  %2830 = vmatprep.subr.mxu0 0.0
  %2831 = vmatpush1.msra.mxu0 0.0
  %2832 = vmatprep.subr.mxu0 0.0
  %2833 = vmatpush1.msra.mxu0 0.0
  %2834 = vmatprep.subr.mxu0 0.0
  %2835 = vmatpush1.msra.mxu0 0.0
  %2836 = vmatprep.subr.mxu0 0.0
  %2837 = vmatpush1.msra.mxu0 0.0
  %2838 = vmatprep.subr.mxu0 0.0
  %2839 = vmatpush1.msra.mxu0 0.0
  %2840 = vmatprep.subr.mxu0 0.0
  %2841 = vmatpush1.msra.mxu0 0.0
  %2842 = vmatprep.subr.mxu0 0.0
  %2843 = vmatpush1.msra.mxu0 0.0
  %2844 = vmatprep.subr.mxu0 0.0
  %2845 = vmatpush1.msra.mxu0 0.0
  %2846 = vmatprep.subr.mxu0 0.0
  %2847 = vmatpush1.msra.mxu0 0.0
  %2848 = vmatprep.subr.mxu0 0.0
  %2849 = vmatpush1.msra.mxu0 0.0
  %2850 = vmatprep.subr.mxu0 0.0
  %2851 = vmatpush1.msra.mxu0 0.0
  %2852 = vmatprep.subr.mxu0 0.0
  %2853 = vmatpush1.msra.mxu0 0.0
  %2854 = vmatprep.subr.mxu0 0.0
  %2855 = vmatpush1.msra.mxu0 0.0
  %2856 = vmatprep.subr.mxu0 0.0
  %2857 = vmatpush1.msra.mxu0 0.0
  %2858 = vmatprep.subr.mxu0 0.0
  %2859 = vmatpush1.msra.mxu0 0.0
  %2860 = vmatprep.subr.mxu0 0.0
  %2861 = vmatpush1.msra.mxu0 0.0
  %2862 = vmatprep.subr.mxu0 0.0
  %2863 = vmatpush1.msra.mxu0 0.0
  %2864 = vmatprep.mubr.f32.mxu0 0.0
  %2865 = vmatmul.mubr.f32.gmra.mrb[0].mxu0 %v2794
  %v2866 = vpop.f32.mrb[0].mxu0
  %v2867 = vadd.f32 %v2790, %v2866
  %v2868 = vpop.f32.mrb[0].mxu0
  %2869 = vdwg.mxu0
  %2870 = vmax.xlane.f32.xlu0 %v2867
  %v2871 = vpop.xlane.xlu0 %2870
  %v2872 = vsub.f32 %v2867, %v2871
  %v2873 = vmul.f32 %v2872, 1.442695
  %v2874 = vpow.pop %v2873
  %2875 = vadd.xlane.f32.xlu0 %v2874
  %v2876 = vpop.xlane.xlu0 %2875
  %v2877 = vlog2.pop %v2876
  %v2878 = vmul.f32 %v2877, 0.6931472
  %v2879 = vsub.f32 %v2872, %v2878
  %2880 = vst [vmem:[%s9] sm:$0xff] %v2879
  // Predicated region
  $region38: #{net_forward.1} parent=0 // pred_check
    _
  $region39: #{net_forward.1} parent=0 // pred_check_branch
    %2882 = sbr.rel (0) target = $region41
  $region40: #{net_forward.1} parent=0 // pred_region
    _
  $region41: #{net_forward.1} parent=0 // pred_fallthru
    _
  // Predicated region
  $region42: #{net_forward.1} parent=0 // pred_check
    _
  $region43: #{net_forward.1} parent=0 // pred_check_branch
    %2884 = sbr.rel (0) target = $region45
  $region44: #{net_forward.1} parent=0 // pred_region
    _
  $region45: #{net_forward.1} parent=0 // pred_fallthru
    _

</llo_original>
